<compile_context>
chip_gen: v7x
topology: tpu7x:2x2x1
jax: 0.10.0
libtpu: 0.0.40
codegen_flags: <defaults>
</compile_context>

<pallas_src>
import jax
import jax.numpy as jnp
from jax.experimental import pallas as pl
from jax.experimental.pallas import tpu as pltpu

KSZ = 3        # kernel_size
STRIDE = 2
PAD = 1
OUT_PAD = 1


def _round_up(v, m):
    return ((v + m - 1) // m) * m


def _pick_tile_n(n_out):
    """Tile for the 8*Cout row axis: full if small, else a divisor <= 512 (prefer mult of 16)."""
    if n_out <= 512:
        return n_out
    for cand in range(512, 15, -16):
        if n_out % cand == 0:
            return cand
    for cand in range(512, 7, -8):
        if n_out % cand == 0:
            return cand
    return n_out


def deconv3d_block_forward(x, weight, bias, *, tile_m=2048):
    """ConvTranspose3d(Cin, Cout, kernel=3, stride=2, padding=1, output_padding=1, bias=True)
    followed by ReLU.

    x:      (N, Cin, D, H, W)     float32
    weight: (Cin, Cout, 3, 3, 3)  float32   (PyTorch ConvTranspose3d layout)
    bias:   (Cout,)               float32
    returns (N, Cout, 2D, 2H, 2W) float32
    """
    n, cin, d, h, w = x.shape
    cout = weight.shape[1]
    cin_p = _round_up(cin, 16)          # sublane/packing-aligned channel count
    k = 8 * cin_p                       # contraction = (shift_d, shift_h, shift_w, ci)
    n_out = 8 * cout                    # rows = (parity_d, parity_h, parity_w, co)

    dp, hp, wp = d + 1, h + 1, w + 1    # far-end-padded spatial extents
    m_valid = n * dp * hp * wp          # flattened padded coordinate space

    # ---- phase / sub-pixel weight: scatter the 27 taps into (8*Cout, 8*Cin_p) ----
    # Per dimension: output parity p, input shift s -> transposed-conv tap k:
    #   (p=0, s=0) -> k=1 ; (p=1, s=0) -> k=2 ; (p=1, s=1) -> k=0 ; (p=0, s=1) -> none
    S = jnp.zeros((2, 2, 3), dtype=weight.dtype)
    S = S.at[0, 0, 1].set(1.0)
    S = S.at[1, 0, 2].set(1.0)
    S = S.at[1, 1, 0].set(1.0)
    w_pad = jnp.pad(weight, ((0, cin_p - cin), (0, 0), (0, 0), (0, 0), (0, 0)))
    # rows = (p_d, p_h, p_w, co), cols = (s_d, s_h, s_w, ci)
    wmat = jnp.einsum('pda,qeb,rfc,ioabc->pqrodefi', S, S, S, w_pad)
    wmat = wmat.reshape(n_out, k).astype(jnp.bfloat16)
    bmat = jnp.tile(bias, 8).reshape(n_out, 1).astype(jnp.float32)

    # ---- activations: channel-major, far-end-padded, flattened, bf16 (single HBM copy) ----
    xt = jnp.transpose(x.astype(jnp.bfloat16), (1, 0, 2, 3, 4))          # (Cin, N, D, H, W)
    xpad = jnp.pad(xt, ((0, cin_p - cin), (0, 0), (0, 1), (0, 1), (0, 1)))
    xpf = xpad.reshape(cin_p, m_valid)                                    # (Cin_p, M_valid)

    # 2x2x2 tap offsets in the padded flat index space
    offsets = [sd * hp * wp + sh * wp + sw
               for sd in (0, 1) for sh in (0, 1) for sw in (0, 1)]
    max_off = offsets[-1]

    # ---- tile_m: multiple of 128, >= tap halo, and >= 2 M-tiles when possible (v7x megacore) ----
    tm = _round_up(max(tile_m, 128), 128)
    tm = min(tm, max(_round_up(-(-m_valid // 2), 128), 128))
    tm = max(tm, _round_up(max_off, 128))
    num_m = -(-m_valid // tm)

    # +1 whole block of zero padding so the "i+1" halo read is always in range
    xpf = jnp.pad(xpf, ((0, 0), (0, (num_m + 1) * tm - m_valid)))

    tile_n = _pick_tile_n(n_out)
    num_j = n_out // tile_n

    def _kernel(w_ref, b_ref, x0_ref, x1_ref, o_ref, col_ref):
        # x0_ref: current M tile, x1_ref: next M tile (halo).  Build the (8*Cin_p, tm)
        # sub-pixel column block in VMEM with 8 shifted slices, then one fat MXU matmul.
        xcat = jnp.concatenate([x0_ref[...], x1_ref[...]], axis=1)        # (Cin_p, 2*tm)
        for s, off in enumerate(offsets):                                 # static unroll (8)
            col_ref[s * cin_p:(s + 1) * cin_p, :] = xcat[:, off:off + tm]
        acc = jnp.dot(w_ref[...], col_ref[...],
                      preferred_element_type=jnp.float32)                 # (tile_n, tm) f32
        acc = acc + b_ref[...]
        o_ref[...] = jnp.maximum(acc, 0.0).astype(o_ref.dtype)            # bf16 store

    cost = pl.CostEstimate(
        flops=2 * num_m * tm * k * n_out,
        transcendentals=0,
        bytes_accessed=(4 * cin_p * num_m * tm            # bf16 activations, current + halo read
                        + 2 * n_out * k * num_m           # bf16 weight stream (re-fetched per M tile)
                        + 4 * n_out                       # f32 bias
                        + 2 * n_out * num_m * tm))        # bf16 output

    out_t = pl.pallas_call(
        _kernel,
        out_shape=jax.ShapeDtypeStruct((n_out, num_m * tm), jnp.bfloat16),
        grid_spec=pltpu.PrefetchScalarGridSpec(
            num_scalar_prefetch=0,
            grid=(num_m, num_j),
            in_specs=[
                pl.BlockSpec((tile_n, k), lambda i, j: (j, 0)),       # phase weight
                pl.BlockSpec((tile_n, 1), lambda i, j: (j, 0)),       # bias
                pl.BlockSpec((cin_p, tm), lambda i, j: (0, i)),       # activations, tile i
                pl.BlockSpec((cin_p, tm), lambda i, j: (0, i + 1)),   # activations, halo tile i+1
            ],
            out_specs=pl.BlockSpec((tile_n, tm), lambda i, j: (j, i)),
            scratch_shapes=[pltpu.VMEM((k, tm), jnp.bfloat16)],       # column block scratch
        ),
        compiler_params=pltpu.CompilerParams(
            dimension_semantics=("parallel", "parallel"),
            vmem_limit_bytes=32 * 1024 * 1024),
        cost_estimate=cost,
    )(wmat, bmat, xpf, xpf)

    # ---- pixel shuffle back to NCDHW (bf16 read; a phase-major consumer could skip this) ----
    out_t = out_t[:, :m_valid]
    out = out_t.reshape(2, 2, 2, cout, n, dp, hp, wp)[:, :, :, :, :, :d, :h, :w]
    out = jnp.transpose(out, (4, 3, 5, 0, 6, 1, 7, 2))    # (N, Cout, D, pd, H, ph, W, pw)
    return out.reshape(n, cout, 2 * d, 2 * h, 2 * w).astype(jnp.float32)


def _reference(x, weight, bias):
    """Pure-XLA f32 reference for ConvTranspose3d(k=3,s=2,p=1,op=1) + ReLU."""
    lo = KSZ - 1 - PAD
    hi = KSZ - 1 - PAD + OUT_PAD
    rhs = jnp.transpose(weight, (1, 0, 2, 3, 4))[:, :, ::-1, ::-1, ::-1]
    y = jax.lax.conv_general_dilated(
        x, rhs,
        window_strides=(1, 1, 1),
        padding=[(lo, hi)] * 3,
        lhs_dilation=(STRIDE, STRIDE, STRIDE),
        dimension_numbers=("NCDHW", "OIDHW", "NCDHW"))
    y = y + bias.reshape(1, -1, 1, 1, 1)
    return jnp.maximum(y, 0.0)


if __name__ == "__main__":
    # Small, deterministic example: N=2, Cin=4, Cout=8, D=H=W=8 -> output 16^3.
    N, CIN, COUT, D, H, W = 2, 4, 8, 8, 8, 8
    key = jax.random.PRNGKey(0)
    kx, kw, kb = jax.random.split(key, 3)

    x = jax.random.normal(kx, (N, CIN, D, H, W), dtype=jnp.float32)
    fan_in = CIN * KSZ * KSZ * KSZ
    bound = 1.0 / (fan_in ** 0.5)
    weight = jax.random.uniform(kw, (CIN, COUT, KSZ, KSZ, KSZ),
                                dtype=jnp.float32, minval=-bound, maxval=bound)
    bias = jax.random.uniform(kb, (COUT,), dtype=jnp.float32,
                              minval=-bound, maxval=bound)

    fwd = jax.jit(deconv3d_block_forward)
    out = jax.block_until_ready(fwd(x, weight, bias))
    ref = jax.block_until_ready(_reference(x, weight, bias))

    assert out.shape == (N, COUT, 2 * D, 2 * H, 2 * W), out.shape
    # bf16 activations/weights/output with f32 MXU accumulation -> loosened tolerance.
    assert jnp.allclose(out, ref, atol=3e-2, rtol=3e-2), \
        float(jnp.max(jnp.abs(out - ref)))

    print("KERNEL_OK")
</pallas_src>

<mosaic_0001>
module attributes {stable_mosaic.version = 11 : i64} {
  func.func @_kernel(%arg0: i32, %arg1: i32, %arg2: memref<64x128xbf16, #tpu.memory_space<vmem>>, %arg3: memref<64x1xf32, #tpu.memory_space<vmem>>, %arg4: memref<16x768xbf16, #tpu.memory_space<vmem>>, %arg5: memref<16x768xbf16, #tpu.memory_space<vmem>>, %arg6: memref<64x768xbf16, #tpu.memory_space<vmem>>, %arg7: memref<128x768xbf16, #tpu.memory_space<vmem>>) attributes {dimension_semantics = [#tpu.dimension_semantics<parallel>, #tpu.dimension_semantics<parallel>], iteration_bounds = array<i64: 2, 1>, scalar_prefetch = 0 : i64, scratch_operands = 1 : i64, tpu.core_type = #tpu.core_type<tc>, window_params = [{transform_indices = @transform_0, window_bounds = array<i64: 64, 128>}, {transform_indices = @transform_1, window_bounds = array<i64: 64, 1>}, {transform_indices = @transform_2, window_bounds = array<i64: 16, 768>}, {transform_indices = @transform_3, window_bounds = array<i64: 16, 768>}, {transform_indices = @transform_4, window_bounds = array<i64: 64, 768>}]} {
    %c0 = arith.constant 0 : index
    %c0_0 = arith.constant 0 : index
    %0 = vector.load %arg4[%c0, %c0_0] : memref<16x768xbf16, #tpu.memory_space<vmem>>, vector<16x768xbf16>
    %c0_1 = arith.constant 0 : index
    %c0_2 = arith.constant 0 : index
    %1 = vector.load %arg5[%c0_1, %c0_2] : memref<16x768xbf16, #tpu.memory_space<vmem>>, vector<16x768xbf16>
    %2 = tpu.concatenate %0, %1 in 1 : vector<16x768xbf16>, vector<16x768xbf16> -> vector<16x1536xbf16>
    %3 = vector.extract_strided_slice %2 {offsets = [0, 0], sizes = [16, 768], strides = [1, 1]} : vector<16x1536xbf16> to vector<16x768xbf16>
    %c0_3 = arith.constant 0 : index
    %c0_4 = arith.constant 0 : index
    %4 = vector.load %arg7[%c0_3, %c0_4] : memref<128x768xbf16, #tpu.memory_space<vmem>>, vector<16x768xbf16>
    tpu.vector_store %arg7[%c0_3, %c0_4], %3 {strides = array<i32>} : memref<128x768xbf16, #tpu.memory_space<vmem>>, vector<16x768xbf16>,
    %5 = vector.extract_strided_slice %2 {offsets = [0, 1], sizes = [16, 768], strides = [1, 1]} : vector<16x1536xbf16> to vector<16x768xbf16>
    %c16 = arith.constant 16 : index
    %c0_5 = arith.constant 0 : index
    %6 = vector.load %arg7[%c16, %c0_5] : memref<128x768xbf16, #tpu.memory_space<vmem>>, vector<16x768xbf16>
    tpu.vector_store %arg7[%c16, %c0_5], %5 {strides = array<i32>} : memref<128x768xbf16, #tpu.memory_space<vmem>>, vector<16x768xbf16>,
    %7 = vector.extract_strided_slice %2 {offsets = [0, 9], sizes = [16, 768], strides = [1, 1]} : vector<16x1536xbf16> to vector<16x768xbf16>
    %c32 = arith.constant 32 : index
    %c0_6 = arith.constant 0 : index
    %8 = vector.load %arg7[%c32, %c0_6] : memref<128x768xbf16, #tpu.memory_space<vmem>>, vector<16x768xbf16>
    tpu.vector_store %arg7[%c32, %c0_6], %7 {strides = array<i32>} : memref<128x768xbf16, #tpu.memory_space<vmem>>, vector<16x768xbf16>,
    %9 = vector.extract_strided_slice %2 {offsets = [0, 10], sizes = [16, 768], strides = [1, 1]} : vector<16x1536xbf16> to vector<16x768xbf16>
    %c48 = arith.constant 48 : index
    %c0_7 = arith.constant 0 : index
    %10 = vector.load %arg7[%c48, %c0_7] : memref<128x768xbf16, #tpu.memory_space<vmem>>, vector<16x768xbf16>
    tpu.vector_store %arg7[%c48, %c0_7], %9 {strides = array<i32>} : memref<128x768xbf16, #tpu.memory_space<vmem>>, vector<16x768xbf16>,
    %11 = vector.extract_strided_slice %2 {offsets = [0, 81], sizes = [16, 768], strides = [1, 1]} : vector<16x1536xbf16> to vector<16x768xbf16>
    %c64 = arith.constant 64 : index
    %c0_8 = arith.constant 0 : index
    %12 = vector.load %arg7[%c64, %c0_8] : memref<128x768xbf16, #tpu.memory_space<vmem>>, vector<16x768xbf16>
    tpu.vector_store %arg7[%c64, %c0_8], %11 {strides = array<i32>} : memref<128x768xbf16, #tpu.memory_space<vmem>>, vector<16x768xbf16>,
    %13 = vector.extract_strided_slice %2 {offsets = [0, 82], sizes = [16, 768], strides = [1, 1]} : vector<16x1536xbf16> to vector<16x768xbf16>
    %c80 = arith.constant 80 : index
    %c0_9 = arith.constant 0 : index
    %14 = vector.load %arg7[%c80, %c0_9] : memref<128x768xbf16, #tpu.memory_space<vmem>>, vector<16x768xbf16>
    tpu.vector_store %arg7[%c80, %c0_9], %13 {strides = array<i32>} : memref<128x768xbf16, #tpu.memory_space<vmem>>, vector<16x768xbf16>,
    %15 = vector.extract_strided_slice %2 {offsets = [0, 90], sizes = [16, 768], strides = [1, 1]} : vector<16x1536xbf16> to vector<16x768xbf16>
    %c96 = arith.constant 96 : index
    %c0_10 = arith.constant 0 : index
    %16 = vector.load %arg7[%c96, %c0_10] : memref<128x768xbf16, #tpu.memory_space<vmem>>, vector<16x768xbf16>
    tpu.vector_store %arg7[%c96, %c0_10], %15 {strides = array<i32>} : memref<128x768xbf16, #tpu.memory_space<vmem>>, vector<16x768xbf16>,
    %17 = vector.extract_strided_slice %2 {offsets = [0, 91], sizes = [16, 768], strides = [1, 1]} : vector<16x1536xbf16> to vector<16x768xbf16>
    %c112 = arith.constant 112 : index
    %c0_11 = arith.constant 0 : index
    %18 = vector.load %arg7[%c112, %c0_11] : memref<128x768xbf16, #tpu.memory_space<vmem>>, vector<16x768xbf16>
    tpu.vector_store %arg7[%c112, %c0_11], %17 {strides = array<i32>} : memref<128x768xbf16, #tpu.memory_space<vmem>>, vector<16x768xbf16>,
    %c0_12 = arith.constant 0 : index
    %c0_13 = arith.constant 0 : index
    %19 = vector.load %arg2[%c0_12, %c0_13] : memref<64x128xbf16, #tpu.memory_space<vmem>>, vector<64x128xbf16>
    %c0_14 = arith.constant 0 : index
    %c0_15 = arith.constant 0 : index
    %20 = vector.load %arg7[%c0_14, %c0_15] : memref<128x768xbf16, #tpu.memory_space<vmem>>, vector<128x768xbf16>
    %cst = arith.constant dense<0.000000e+00> : vector<64x768xf32>
    %21 = tpu.matmul %19, %20, %cst {dimension_numbers = #tpu.dot_dimension_numbers<[1], [0], [0], [1], [0, 0, 1, 1], [], []>} : vector<64x128xbf16>, vector<128x768xbf16>, vector<64x768xf32> -> vector<64x768xf32>
    %c0_16 = arith.constant 0 : index
    %c0_17 = arith.constant 0 : index
    %22 = vector.load %arg3[%c0_16, %c0_17] : memref<64x1xf32, #tpu.memory_space<vmem>>, vector<64x1xf32>
    %23 = vector.broadcast %22 : vector<64x1xf32> to vector<64x768xf32>
    %24 = arith.addf %21, %23 : vector<64x768xf32>
    %cst_18 = arith.constant 0.000000e+00 : f32
    %25 = vector.broadcast %cst_18 : f32 to vector<64x768xf32>
    %26 = arith.maximumf %24, %25 : vector<64x768xf32>
    %27 = arith.truncf %26 : vector<64x768xf32> to vector<64x768xbf16>
    %c0_19 = arith.constant 0 : index
    %c0_20 = arith.constant 0 : index
    %28 = vector.load %arg6[%c0_19, %c0_20] : memref<64x768xbf16, #tpu.memory_space<vmem>>, vector<64x768xbf16>
    tpu.vector_store %arg6[%c0_19, %c0_20], %27 {strides = array<i32>} : memref<64x768xbf16, #tpu.memory_space<vmem>>, vector<64x768xbf16>,
    return
  }
  func.func @transform_0(%arg0: i32, %arg1: i32) -> (i32, i32) {
    %c0_i32 = arith.constant 0 : i32
    %c0_i32_0 = arith.constant 0 : i32
    return %arg1, %c0_i32 : i32, i32
  }
  func.func @transform_1(%arg0: i32, %arg1: i32) -> (i32, i32) {
    %c0_i32 = arith.constant 0 : i32
    %c0_i32_0 = arith.constant 0 : i32
    return %arg1, %c0_i32 : i32, i32
  }
  func.func @transform_2(%arg0: i32, %arg1: i32) -> (i32, i32) {
    %c0_i32 = arith.constant 0 : i32
    %c0_i32_0 = arith.constant 0 : i32
    return %c0_i32, %arg0 : i32, i32
  }
  func.func @transform_3(%arg0: i32, %arg1: i32) -> (i32, i32) {
    %c1_i32 = arith.constant 1 : i32
    %0 = arith.addi %arg0, %c1_i32 : i32
    %c0_i32 = arith.constant 0 : i32
    %c0_i32_0 = arith.constant 0 : i32
    return %c0_i32, %0 : i32, i32
  }
  func.func @transform_4(%arg0: i32, %arg1: i32) -> (i32, i32) {
    %c0_i32 = arith.constant 0 : i32
    return %arg1, %arg0 : i32, i32
  }
}

</mosaic_0001>

<llo_original>
// kernel: tile.8
$region0: #{tile.8}
  #allocation2 [shape = 's32[1]{0}', space=sflag, size = 0x4, scoped, tag = 'scoped memory for tile.8']
  %s0 = inlined_call_operand.hbm [shape: f32[8], index: 0, kind: input, shape index: {}]
  %s1 = inlined_call_operand.vmem [shape: f32[8,8], index: 1, kind: output, shape index: {}]
  $region1: #{tile.8} parent=0
    #allocation0 [shape = 'u8[512]{0}', space=vmem, size = 0x400, scoped, tag = 'operand span for operand 0']
    #allocation1 [shape = 's32[1]{0}', space=sflag, size = 0x4, scoped, tag = 'scoped memory for tile.8']
    %2 = vsyncpa [#allocation1], 0
    // Predicated region
    $region2: #{tile.8} parent=1 // pred_check
      _
    $region3: #{tile.8} parent=1 // pred_check_branch
      %4 = sbr.rel (0) target = $region5
    $region4: #{tile.8} parent=1 // pred_region
      %s6 = ssub.s32 16, 16
      %7 = vsyncadd [#allocation1], %s6
      %s9 = sshll.u32 [#allocation0], 4
      %s10 = int_to_ptr.vmem [resolvable:$true] %s9
      %12 = dma.hbm_to_vmem [thread:$0]  %s0, 16, %s10, [#allocation1]
    $region5: #{tile.8} parent=1 // pred_fallthru
      _
    // Predicated region
    $region6: #{tile.8} parent=1 // pred_check
      _
    $region7: #{tile.8} parent=1 // pred_check_branch
      %14 = sbr.rel (0) target = $region9
    $region8: #{tile.8} parent=1 // pred_region
      %15 = dma.done [#allocation1], 16
    $region9: #{tile.8} parent=1 // pred_fallthru
      _
    %v16 = vld [vmem:[#allocation0] ss:$0 sm:$0xff]
    %17 = vst [vmem:[%s1] sm:$0xff] %v16
    %18 = vsyncpa [#allocation1], 1

// kernel: tile.0
$region0: #{tile.0}
  %s0 = inlined_call_operand.vmem [shape: f32[8,8], index: 0, kind: input, shape index: {}]
  %s1 = inlined_call_operand.vmem [shape: f32[64,1], index: 1, kind: output, shape index: {}]
  %v2 = vld [vmem:[%s0] sm:$0xff]
  %vm3 = vcmask 7168
  %4 = vst.msk [vmem:[%s1] ss:$8 sm:$0xf] %vm3, %v2
  %5 = vst.msk [vmem:[%s1] ss:$8 sm:$0xf0] %vm3, %v2
  %v6 = vld [vmem:[%s0] sm:$0xff]
  %7 = vrot.lane.b32.xlu0 %v6, 127
  %v8 = vpop.permute.xlu0 %7
  %vm9 = vcmask 7168
  %s10 = scalar_lea.vmem %s1, 1
  %11 = vst.msk [vmem:[%s10] ss:$8 sm:$0xf] %vm9, %v8
  %s12 = scalar_lea.vmem %s1, 1
  %13 = vst.msk [vmem:[%s12] ss:$8 sm:$0xf0] %vm9, %v8
  %v14 = vld [vmem:[%s0] sm:$0xff]
  %15 = vrot.lane.b32.xlu0 %v14, 126
  %v16 = vpop.permute.xlu0 %15
  %vm17 = vcmask 7168
  %s18 = scalar_lea.vmem %s1, 2
  %19 = vst.msk [vmem:[%s18] ss:$8 sm:$0xf] %vm17, %v16
  %s20 = scalar_lea.vmem %s1, 2
  %21 = vst.msk [vmem:[%s20] ss:$8 sm:$0xf0] %vm17, %v16
  %v22 = vld [vmem:[%s0] sm:$0xff]
  %23 = vrot.lane.b32.xlu0 %v22, 125
  %v24 = vpop.permute.xlu0 %23
  %vm25 = vcmask 7168
  %s26 = scalar_lea.vmem %s1, 3
  %27 = vst.msk [vmem:[%s26] ss:$8 sm:$0xf] %vm25, %v24
  %s28 = scalar_lea.vmem %s1, 3
  %29 = vst.msk [vmem:[%s28] ss:$8 sm:$0xf0] %vm25, %v24
  %v30 = vld [vmem:[%s0] sm:$0xff]
  %31 = vrot.lane.b32.xlu0 %v30, 124
  %v32 = vpop.permute.xlu0 %31
  %vm33 = vcmask 7168
  %s34 = scalar_lea.vmem %s1, 4
  %35 = vst.msk [vmem:[%s34] ss:$8 sm:$0xf] %vm33, %v32
  %s36 = scalar_lea.vmem %s1, 4
  %37 = vst.msk [vmem:[%s36] ss:$8 sm:$0xf0] %vm33, %v32
  %v38 = vld [vmem:[%s0] sm:$0xff]
  %39 = vrot.lane.b32.xlu0 %v38, 123
  %v40 = vpop.permute.xlu0 %39
  %vm41 = vcmask 7168
  %s42 = scalar_lea.vmem %s1, 5
  %43 = vst.msk [vmem:[%s42] ss:$8 sm:$0xf] %vm41, %v40
  %s44 = scalar_lea.vmem %s1, 5
  %45 = vst.msk [vmem:[%s44] ss:$8 sm:$0xf0] %vm41, %v40
  %v46 = vld [vmem:[%s0] sm:$0xff]
  %47 = vrot.lane.b32.xlu0 %v46, 122
  %v48 = vpop.permute.xlu0 %47
  %vm49 = vcmask 7168
  %s50 = scalar_lea.vmem %s1, 6
  %51 = vst.msk [vmem:[%s50] ss:$8 sm:$0xf] %vm49, %v48
  %s52 = scalar_lea.vmem %s1, 6
  %53 = vst.msk [vmem:[%s52] ss:$8 sm:$0xf0] %vm49, %v48
  %v54 = vld [vmem:[%s0] sm:$0xff]
  %55 = vrot.lane.b32.xlu0 %v54, 121
  %v56 = vpop.permute.xlu0 %55
  %vm57 = vcmask 7168
  %s58 = scalar_lea.vmem %s1, 7
  %59 = vst.msk [vmem:[%s58] ss:$8 sm:$0xf] %vm57, %v56
  %s60 = scalar_lea.vmem %s1, 7
  %61 = vst.msk [vmem:[%s60] ss:$8 sm:$0xf0] %vm57, %v56

// kernel: deconv3d_block_forward.1
$region0: #{deconv3d_block_forward.1}
  #allocation0 [shape = 'u32[]', space=smem, size = 0x4, offset = 0x4, fixed_abs, tag = 'smem constant byte address 0x4 - core index']
  #allocation1 [shape = 'u32[144,128]{1,0:T(1,128)}', space=vmem, size = 0x12000, scoped, tag = 'internal scratch']
  #allocation2 [shape = 'bf16[128,768]{1,0:T(16,128)(2,1)}', space=vmem, size = 0x30000, scoped, tag = 'scratch operand']
  %s0 = inlined_call_operand.vmem [shape: bf16[64,128], index: 0, kind: input, shape index: {}]
  %s1 = inlined_call_operand.vmem [shape: f32[64,1], index: 1, kind: input, shape index: {}]
  %s2 = inlined_call_operand.vmem [shape: bf16[16,2304], index: 2, kind: input, shape index: {}, may-alias: {2,3}]
  %s3 = inlined_call_operand.vmem [shape: bf16[16,2304], index: 3, kind: input, shape index: {}, may-alias: {2,3}]
  %s4 = inlined_call_operand.vmem [shape: bf16[64,1536], index: 4, kind: output, shape index: {}]
  %s5 = sld [smem:[#allocation0]]
  $region114: #{deconv3d_block_forward.1} parent=0
    _
  %s7 = ssub.s32 1, %s5
  %s8 = scalar_select 0, %s7, %s5
  $region1: #{deconv3d_block_forward.1} parent=0
    #allocation3 [shape = 'u8[49152]{0}', space=vmem, size = 0xc000, scoped, tag = 'input window, operand 2']
    #allocation4 [shape = 'u8[49152]{0}', space=vmem, size = 0xc000, scoped, tag = 'input window, operand 3']
    #allocation5 [shape = 'u8[196608]{0}', space=vmem, size = 0x30000, scoped, tag = 'output window, operand 0']
    loop: start=0, step=1, limit=4
    $region2: #{deconv3d_block_forward.1} parent=1 // loop_pre_header
      _
    $region3: #{deconv3d_block_forward.1} parent=1 // loop_header
      %s10 = sphi 0, %s14
      %p11 = scmp.ge.s32.totalorder %s10, 4
      %s17 = sphi 0, %s29
      %s18 = sphi 0, %s25
      %s19 = sphi 0, %s17
      %s20 = sphi 0, %s18
      %s21 = sphi 0, %s19
      %s22 = sphi 0, %s20
      %s32 = sphi 0, %s34
      %s35 = sphi 0, %s32
      %s36 = sphi 0, %s35
      %s52 = sphi 0, %s36
      %s58 = sphi 0, %s60
      %s61 = sphi 0, %s58
      %s62 = sphi 0, %s61
      %s78 = sphi 0, %s62
      %s84 = sphi 0, %s86
      %s87 = sphi 0, %s84
      %s88 = sphi 0, %s87
      %s104 = sphi 0, %s88
      %s112 = sphi 0, %s114
      %s115 = sphi 0, %s112
      %s116 = sphi 0, %s115
      %s132 = sphi 0, %s116
      %s140 = sphi 0, %s142
      %s143 = sphi 0, %s140
      %s144 = sphi 0, %s143
      %s160 = sphi 0, %s144
    $region4: #{deconv3d_block_forward.1} parent=1 // loop_header_branch
      %13 = sbr.rel (%p11) target = $region8
    $region5: #{deconv3d_block_forward.1} parent=1 // loop_body
      %s15 = ssub.s32 %s10, 1
      %s16 = ssub.s32 %s10, 2
      %s23 = sadd.s32 1, %s18
      %p24 = scmp.ge.s32.totalorder %s23, 1
      %s25 = scalar_select %p24, 0, %s23
      %s26 = sadd.s32 1, %s17
      %s27 = scalar_select %p24, %s26, %s17
      %p28 = scmp.ge.s32.totalorder %s27, 2
      %s29 = scalar_select %p28, 0, %s27
      %s30 = ssub.s32 %s18, %s25
      %p31 = scmp.eq.s32.totalorder %s30, 0
      %s33 = sadd.s32 %s32, 1
      %s34 = scalar_select %p31, %s32, %s33
      %p37 = pneg %p31
      %p38 = scmp.eq.s32.totalorder %s10, 1
      %p39 = por %p37, %p38
      %p40 = scmp.ne.s32.totalorder %s32, %s35
      %p41 = scmp.eq.s32.totalorder %s10, 0
      %p42 = por %p40, %p41
      %p43 = scmp.ne.s32.totalorder %s32, %s35
      %p44 = scmp.eq.s32.totalorder %s15, 1
      %p45 = por %p43, %p44
      %p46 = scmp.ne.s32.totalorder %s35, %s36
      %p47 = scmp.eq.s32.totalorder %s15, 0
      %p48 = por %p46, %p47
      %p49 = scmp.ne.s32.totalorder %s35, %s36
      %p50 = scmp.eq.s32.totalorder %s16, 1
      %p51 = por %p49, %p50
      %p53 = scmp.ne.s32.totalorder %s36, %s52
      %p54 = scmp.eq.s32.totalorder %s16, 0
      %p55 = por %p53, %p54
      %s56 = ssub.s32 %s18, %s25
      %p57 = scmp.eq.s32.totalorder %s56, 0
      %s59 = sadd.s32 %s58, 1
      %s60 = scalar_select %p57, %s58, %s59
      %p63 = pneg %p57
      %p64 = scmp.eq.s32.totalorder %s10, 1
      %p65 = por %p63, %p64
      %p66 = scmp.ne.s32.totalorder %s58, %s61
      %p67 = scmp.eq.s32.totalorder %s10, 0
      %p68 = por %p66, %p67
      %p69 = scmp.ne.s32.totalorder %s58, %s61
      %p70 = scmp.eq.s32.totalorder %s15, 1
      %p71 = por %p69, %p70
      %p72 = scmp.ne.s32.totalorder %s61, %s62
      %p73 = scmp.eq.s32.totalorder %s15, 0
      %p74 = por %p72, %p73
      %p75 = scmp.ne.s32.totalorder %s61, %s62
      %p76 = scmp.eq.s32.totalorder %s16, 1
      %p77 = por %p75, %p76
      %p79 = scmp.ne.s32.totalorder %s62, %s78
      %p80 = scmp.eq.s32.totalorder %s16, 0
      %p81 = por %p79, %p80
      %s82 = ssub.s32 %s17, %s29
      %p83 = scmp.eq.s32.totalorder %s82, 0
      %s85 = sadd.s32 %s84, 1
      %s86 = scalar_select %p83, %s84, %s85
      %p89 = pneg %p83
      %p90 = scmp.eq.s32.totalorder %s10, 1
      %p91 = por %p89, %p90
      %p92 = scmp.ne.s32.totalorder %s84, %s87
      %p93 = scmp.eq.s32.totalorder %s10, 0
      %p94 = por %p92, %p93
      %p95 = scmp.ne.s32.totalorder %s84, %s87
      %p96 = scmp.eq.s32.totalorder %s15, 1
      %p97 = por %p95, %p96
      %p98 = scmp.ne.s32.totalorder %s87, %s88
      %p99 = scmp.eq.s32.totalorder %s15, 0
      %p100 = por %p98, %p99
      %p101 = scmp.ne.s32.totalorder %s87, %s88
      %p102 = scmp.eq.s32.totalorder %s16, 1
      %p103 = por %p101, %p102
      %p105 = scmp.ne.s32.totalorder %s88, %s104
      %p106 = scmp.eq.s32.totalorder %s16, 0
      %p107 = por %p105, %p106
      %s108 = sadd.s32 %s17, 1
      %s109 = sadd.s32 %s29, 1
      %s110 = ssub.s32 %s108, %s109
      %p111 = scmp.eq.s32.totalorder %s110, 0
      %s113 = sadd.s32 %s112, 1
      %s114 = scalar_select %p111, %s112, %s113
      %p117 = pneg %p111
      %p118 = scmp.eq.s32.totalorder %s10, 1
      %p119 = por %p117, %p118
      %p120 = scmp.ne.s32.totalorder %s112, %s115
      %p121 = scmp.eq.s32.totalorder %s10, 0
      %p122 = por %p120, %p121
      %p123 = scmp.ne.s32.totalorder %s112, %s115
      %p124 = scmp.eq.s32.totalorder %s15, 1
      %p125 = por %p123, %p124
      %p126 = scmp.ne.s32.totalorder %s115, %s116
      %p127 = scmp.eq.s32.totalorder %s15, 0
      %p128 = por %p126, %p127
      %p129 = scmp.ne.s32.totalorder %s115, %s116
      %p130 = scmp.eq.s32.totalorder %s16, 1
      %p131 = por %p129, %p130
      %p133 = scmp.ne.s32.totalorder %s116, %s132
      %p134 = scmp.eq.s32.totalorder %s16, 0
      %p135 = por %p133, %p134
      %s136 = ssub.s32 %s18, %s25
      %s137 = ssub.s32 %s17, %s29
      %s138 = sor.u32 %s136, %s137
      %p139 = scmp.eq.s32.totalorder %s138, 0
      %s141 = sadd.s32 %s140, 1
      %s142 = scalar_select %p139, %s140, %s141
      %p145 = pneg %p139
      %p146 = scmp.eq.s32.totalorder %s10, 1
      %p147 = por %p145, %p146
      %p148 = scmp.ne.s32.totalorder %s140, %s143
      %p149 = scmp.eq.s32.totalorder %s10, 0
      %p150 = por %p148, %p149
      %p151 = scmp.ne.s32.totalorder %s140, %s143
      %p152 = scmp.eq.s32.totalorder %s15, 1
      %p153 = por %p151, %p152
      %p154 = scmp.ne.s32.totalorder %s143, %s144
      %p155 = scmp.eq.s32.totalorder %s15, 0
      %p156 = por %p154, %p155
      %p157 = scmp.ne.s32.totalorder %s143, %s144
      %p158 = scmp.eq.s32.totalorder %s16, 1
      %p159 = por %p157, %p158
      %p161 = scmp.ne.s32.totalorder %s144, %s160
      %p162 = scmp.eq.s32.totalorder %s16, 0
      %p163 = por %p161, %p162
      %p164 = scmp.le.s32.totalorder 1, %s10
      %p165 = scmp.lt.s32.totalorder %s10, 3
      %p166 = pnand %p164, %p165
      %p167 = pneg %p166
      // Predicated region
      $region9: #{deconv3d_block_forward.1} parent=5 // pred_check
        _
      $region10: #{deconv3d_block_forward.1} parent=5 // pred_check_branch
        %169 = sbr.rel (%p166) target = $region12
      $region11: #{deconv3d_block_forward.1} parent=5 // pred_region
        %s170 = ssub.s32 %s10, 1
        // Predicated region
        $region13: #{deconv3d_block_forward.1} parent=11 // pred_check
          %p171 = pneg %p48
        $region14: #{deconv3d_block_forward.1} parent=11 // pred_check_branch
          %173 = sbr.rel (%p171) target = $region16
        $region15: #{deconv3d_block_forward.1} parent=11 // pred_region
          %s174 = smul.u32 8, %s20
          %p175 = scmp.lt.s32.totalorder %s174, 7
          %s176 = scalar_select %p175, %s174, 7
          %s177 = smul.addr %s176, 4
          %s178 = scalar_lea.vmem %s0, %s177
          %s179 = smul.u32 8, %s20
        $region16: #{deconv3d_block_forward.1} parent=11 // pred_fallthru
          _
        // Predicated region
        $region17: #{deconv3d_block_forward.1} parent=11 // pred_check
          %p180 = pneg %p74
        $region18: #{deconv3d_block_forward.1} parent=11 // pred_check_branch
          %182 = sbr.rel (%p180) target = $region20
        $region19: #{deconv3d_block_forward.1} parent=11 // pred_region
          %s183 = smul.u32 8, %s20
          %p184 = scmp.lt.s32.totalorder %s183, 7
          %s185 = scalar_select %p184, %s183, 7
          %s186 = smul.addr %s185, 8
          %s187 = scalar_lea.vmem %s1, %s186
          %s188 = smul.u32 8, %s20
        $region20: #{deconv3d_block_forward.1} parent=11 // pred_fallthru
          _
      $region12: #{deconv3d_block_forward.1} parent=5 // pred_fallthru
        _
      %p189 = scmp.lt.s32.totalorder %s10, 2
      // Predicated region
      $region21: #{deconv3d_block_forward.1} parent=5 // pred_check
        %p190 = pneg %p189
      $region22: #{deconv3d_block_forward.1} parent=5 // pred_check_branch
        %192 = sbr.rel (%p190) target = $region24
      $region23: #{deconv3d_block_forward.1} parent=5 // pred_region
        // Predicated region
        $region25: #{deconv3d_block_forward.1} parent=23 // pred_check
          %p193 = pneg %p94
        $region26: #{deconv3d_block_forward.1} parent=23 // pred_check_branch
          %195 = sbr.rel (%p193) target = $region28
        $region27: #{deconv3d_block_forward.1} parent=23 // pred_region
          %s196 = sand.u32 %s84, 1
          %s197 = sand.u32 %s84, 1
          %s198 = smul.addr %s197, 48
          %s199 = scalar_lea.vmem [#allocation3], %s198
          %s200 = smul.u32 6, %s17
          %s201 = smul.addr %s200, 4
          %s202 = scalar_lea.vmem %s2, %s201
          // Predicated region
          $region29: #{deconv3d_block_forward.1} parent=27 // pred_check
            _
          $region30: #{deconv3d_block_forward.1} parent=27 // pred_check_branch
            %204 = sbr.rel (0) target = $region32
          $region31: #{deconv3d_block_forward.1} parent=27 // pred_region
            // Predicated region
            $region33: #{deconv3d_block_forward.1} parent=31 // pred_check
              _
            $region34: #{deconv3d_block_forward.1} parent=31 // pred_check_branch
              %206 = sbr.rel (0) target = $region36
            $region35: #{deconv3d_block_forward.1} parent=31 // pred_region
              loop: start=0, step=1, limit=1
              $region37: #{deconv3d_block_forward.1} parent=35 // loop_pre_header
                _
              $region38: #{deconv3d_block_forward.1} parent=35 // loop_header
                %s208 = sphi 0, %s212
                %p209 = scmp.ge.s32.totalorder %s208, 1
                %s213 = sphi %s202, %s202
                %s214 = sphi %s199, %s199
              $region39: #{deconv3d_block_forward.1} parent=35 // loop_header_branch
                %211 = sbr.rel (%p209) target = $region43
              $region40: #{deconv3d_block_forward.1} parent=35 // loop_body
                %v215 = vld [vmem:[%s213] sm:$0xff]
                %216 = vst [vmem:[%s214] sm:$0xff] %v215
                %v217 = vld [vmem:[%s213 + $0x8] sm:$0xff]
                %218 = vst [vmem:[%s214 + $0x8] sm:$0xff] %v217
                %v219 = vld [vmem:[%s213 + $0x10] sm:$0xff]
                %220 = vst [vmem:[%s214 + $0x10] sm:$0xff] %v219
                %v221 = vld [vmem:[%s213 + $0x48] sm:$0xff]
                %222 = vst [vmem:[%s214 + $0x18] sm:$0xff] %v221
                %v223 = vld [vmem:[%s213 + $0x50] sm:$0xff]
                %224 = vst [vmem:[%s214 + $0x20] sm:$0xff] %v223
                %v225 = vld [vmem:[%s213 + $0x58] sm:$0xff]
                %226 = vst [vmem:[%s214 + $0x28] sm:$0xff] %v225
              $region41: #{deconv3d_block_forward.1} parent=35 // loop_footer
                %s212 = sadd.s32 1, %s208
              $region42: #{deconv3d_block_forward.1} parent=35 // loop_footer_branch
                %207 = sbr.rel target = $region38
              $region43: #{deconv3d_block_forward.1} parent=35 // loop_exit
                _
            $region36: #{deconv3d_block_forward.1} parent=31 // pred_fallthru
              _
            // Predicated region
            $region44: #{deconv3d_block_forward.1} parent=31 // pred_check
              _
            $region45: #{deconv3d_block_forward.1} parent=31 // pred_check_branch
              %228 = sbr.rel target = $region47
            $region46: #{deconv3d_block_forward.1} parent=31 // pred_region
              _
            $region47: #{deconv3d_block_forward.1} parent=31 // pred_fallthru
              _
          $region32: #{deconv3d_block_forward.1} parent=27 // pred_fallthru
            _
          %229 = vnop
        $region28: #{deconv3d_block_forward.1} parent=23 // pred_fallthru
          _
        // Predicated region
        $region48: #{deconv3d_block_forward.1} parent=23 // pred_check
          %p230 = pneg %p122
        $region49: #{deconv3d_block_forward.1} parent=23 // pred_check_branch
          %232 = sbr.rel (%p230) target = $region51
        $region50: #{deconv3d_block_forward.1} parent=23 // pred_region
          %s233 = sand.u32 %s112, 1
          %s234 = sand.u32 %s112, 1
          %s235 = smul.addr %s234, 48
          %s236 = scalar_lea.vmem [#allocation4], %s235
          %s237 = sadd.s32 %s17, 1
          %s238 = smul.u32 6, %s237
          %s239 = smul.addr %s238, 4
          %s240 = scalar_lea.vmem %s3, %s239
          // Predicated region
          $region52: #{deconv3d_block_forward.1} parent=50 // pred_check
            _
          $region53: #{deconv3d_block_forward.1} parent=50 // pred_check_branch
            %242 = sbr.rel (0) target = $region55
          $region54: #{deconv3d_block_forward.1} parent=50 // pred_region
            // Predicated region
            $region56: #{deconv3d_block_forward.1} parent=54 // pred_check
              _
            $region57: #{deconv3d_block_forward.1} parent=54 // pred_check_branch
              %244 = sbr.rel (0) target = $region59
            $region58: #{deconv3d_block_forward.1} parent=54 // pred_region
              loop: start=0, step=1, limit=1
              $region60: #{deconv3d_block_forward.1} parent=58 // loop_pre_header
                _
              $region61: #{deconv3d_block_forward.1} parent=58 // loop_header
                %s246 = sphi 0, %s250
                %p247 = scmp.ge.s32.totalorder %s246, 1
                %s251 = sphi %s240, %s240
                %s252 = sphi %s236, %s236
              $region62: #{deconv3d_block_forward.1} parent=58 // loop_header_branch
                %249 = sbr.rel (%p247) target = $region66
              $region63: #{deconv3d_block_forward.1} parent=58 // loop_body
                %v253 = vld [vmem:[%s251] sm:$0xff]
                %254 = vst [vmem:[%s252] sm:$0xff] %v253
                %v255 = vld [vmem:[%s251 + $0x8] sm:$0xff]
                %256 = vst [vmem:[%s252 + $0x8] sm:$0xff] %v255
                %v257 = vld [vmem:[%s251 + $0x10] sm:$0xff]
                %258 = vst [vmem:[%s252 + $0x10] sm:$0xff] %v257
                %v259 = vld [vmem:[%s251 + $0x48] sm:$0xff]
                %260 = vst [vmem:[%s252 + $0x18] sm:$0xff] %v259
                %v261 = vld [vmem:[%s251 + $0x50] sm:$0xff]
                %262 = vst [vmem:[%s252 + $0x20] sm:$0xff] %v261
                %v263 = vld [vmem:[%s251 + $0x58] sm:$0xff]
                %264 = vst [vmem:[%s252 + $0x28] sm:$0xff] %v263
              $region64: #{deconv3d_block_forward.1} parent=58 // loop_footer
                %s250 = sadd.s32 1, %s246
              $region65: #{deconv3d_block_forward.1} parent=58 // loop_footer_branch
                %245 = sbr.rel target = $region61
              $region66: #{deconv3d_block_forward.1} parent=58 // loop_exit
                _
            $region59: #{deconv3d_block_forward.1} parent=54 // pred_fallthru
              _
            // Predicated region
            $region67: #{deconv3d_block_forward.1} parent=54 // pred_check
              _
            $region68: #{deconv3d_block_forward.1} parent=54 // pred_check_branch
              %266 = sbr.rel target = $region70
            $region69: #{deconv3d_block_forward.1} parent=54 // pred_region
              _
            $region70: #{deconv3d_block_forward.1} parent=54 // pred_fallthru
              _
          $region55: #{deconv3d_block_forward.1} parent=50 // pred_fallthru
            _
          %267 = vnop
        $region51: #{deconv3d_block_forward.1} parent=23 // pred_fallthru
          _
      $region24: #{deconv3d_block_forward.1} parent=5 // pred_fallthru
        _
      %p268 = scmp.le.s32.totalorder 1, %s10
      %p269 = scmp.lt.s32.totalorder %s10, 3
      %p270 = pnand %p268, %p269
      %p271 = pneg %p270
      // Predicated region
      $region71: #{deconv3d_block_forward.1} parent=5 // pred_check
        _
      $region72: #{deconv3d_block_forward.1} parent=5 // pred_check_branch
        %273 = sbr.rel (%p270) target = $region74
      $region73: #{deconv3d_block_forward.1} parent=5 // pred_region
        %s274 = ssub.s32 %s10, 1
        %s275 = sand.u32 %s87, 1
        %s276 = sand.u32 %s87, 1
        %s277 = smul.addr %s276, 48
        %s278 = scalar_lea.vmem [#allocation3], %s277
        // Predicated region
        $region75: #{deconv3d_block_forward.1} parent=73 // pred_check
          %p279 = pneg %p100
        $region76: #{deconv3d_block_forward.1} parent=73 // pred_check_branch
          %281 = sbr.rel (%p279) target = $region78
        $region77: #{deconv3d_block_forward.1} parent=73 // pred_region
          _
        $region78: #{deconv3d_block_forward.1} parent=73 // pred_fallthru
          _
        %s282 = sand.u32 %s115, 1
        %s283 = sand.u32 %s115, 1
        %s284 = smul.addr %s283, 48
        %s285 = scalar_lea.vmem [#allocation4], %s284
        // Predicated region
        $region79: #{deconv3d_block_forward.1} parent=73 // pred_check
          %p286 = pneg %p128
        $region80: #{deconv3d_block_forward.1} parent=73 // pred_check_branch
          %288 = sbr.rel (%p286) target = $region82
        $region81: #{deconv3d_block_forward.1} parent=73 // pred_region
          _
        $region82: #{deconv3d_block_forward.1} parent=73 // pred_fallthru
          _
        %s289 = smul.u32 8, %s20
        %p290 = scmp.lt.s32.totalorder %s289, 7
        %s291 = scalar_select %p290, %s289, 7
        %s292 = smul.addr %s291, 4
        %s293 = scalar_lea.vmem %s0, %s292
        %p294 = pneg %p48
        %p295 = pneg %p45
        %s296 = smul.u32 8, %s20
        %p297 = scmp.lt.s32.totalorder %s296, 7
        %s298 = scalar_select %p297, %s296, 7
        %s299 = smul.addr %s298, 8
        %s300 = scalar_lea.vmem %s1, %s299
        %p301 = pneg %p74
        %p302 = pneg %p71
        %s303 = sand.u32 %s87, 1
        %s304 = sand.u32 %s87, 1
        %s305 = smul.addr %s304, 48
        %s306 = scalar_lea.vmem [#allocation3], %s305
        %p307 = pneg %p100
        %p308 = pneg %p97
        %s309 = sand.u32 %s115, 1
        %s310 = sand.u32 %s115, 1
        %s311 = smul.addr %s310, 48
        %s312 = scalar_lea.vmem [#allocation4], %s311
        %p313 = pneg %p128
        %p314 = pneg %p125
        %p315 = pneg %p156
        %p316 = pneg %p153
        %s317 = sand.u32 %s143, 1
        %s318 = sand.u32 %s143, 1
        %s319 = smul.addr %s318, 192
        %s320 = scalar_lea.vmem [#allocation5], %s319
        %s321 = smul.u32 8, %s20
        %p322 = scmp.lt.s32.totalorder %s321, 7
        %s323 = scalar_select %p322, %s321, 7
        %s324 = smul.addr %s323, 4
        %s325 = scalar_lea.vmem %s0, %s324
        %s326 = smul.u32 8, %s20
        %s327 = smul.u32 8, %s20
        %p328 = scmp.lt.s32.totalorder %s327, 7
        %s329 = scalar_select %p328, %s327, 7
        %s330 = smul.addr %s329, 8
        %s331 = scalar_lea.vmem %s1, %s330
        %s332 = smul.u32 8, %s20
        %s333 = smul.u32 6, %s19
        %s334 = sadd.s32 %s19, 1
        %s335 = smul.u32 6, %s334
        %s336 = smul.u32 8, %s20
        %s337 = smul.u32 6, %s19
        %v339 = vld [vmem:[%s278] sm:$0xff]
        %v340 = vld [vmem:[%s278 + $0x8] sm:$0xff]
        %v341 = vld [vmem:[%s278 + $0x10] sm:$0xff]
        %v342 = vld [vmem:[%s278 + $0x18] sm:$0xff]
        %v343 = vld [vmem:[%s278 + $0x20] sm:$0xff]
        %v344 = vld [vmem:[%s278 + $0x28] sm:$0xff]
        %v345 = vld [vmem:[%s285] sm:$0xff]
        %v346 = vld [vmem:[%s285 + $0x18] sm:$0xff]
        %v353 = vunpack.c.l.b16 %v339
        %v354 = vunpack.c.h.b16 %v339
        %v355 = vunpack.c.l.b16 %v340
        %v356 = vunpack.c.h.b16 %v340
        %v357 = vunpack.c.l.b16 %v341
        %v358 = vunpack.c.h.b16 %v341
        %v359 = vunpack.c.l.b16 %v342
        %v360 = vunpack.c.h.b16 %v342
        %v361 = vunpack.c.l.b16 %v343
        %v362 = vunpack.c.h.b16 %v343
        %v363 = vunpack.c.l.b16 %v344
        %v364 = vunpack.c.h.b16 %v344
        %v365 = vpack.c.b16 %v359, %v353
        %v366 = vpack.c.b16 %v360, %v354
        %v367 = vpack.c.b16 %v361, %v355
        %v368 = vpack.c.b16 %v362, %v356
        %v369 = vpack.c.b16 %v363, %v357
        %v370 = vpack.c.b16 %v364, %v358
        %v379 = vunpack.c.l.b16 %v345
        %v380 = vunpack.c.l.b16 %v346
        %v381 = vpack.c.b16 %v380, %v379
        %382 = vst [vmem:[#allocation2] sm:$0xff] %v365
        %383 = vst [vmem:[#allocation2 + $0x8] sm:$0xff] %v366
        %384 = vst [vmem:[#allocation2 + $0x10] sm:$0xff] %v367
        %385 = vst [vmem:[#allocation2 + $0x18] sm:$0xff] %v368
        %386 = vst [vmem:[#allocation2 + $0x20] sm:$0xff] %v369
        %387 = vst [vmem:[#allocation2 + $0x28] sm:$0xff] %v370
        %388 = vrot.lane.b32.xlu0 %v365, 127
        %v389 = vpop.permute.xlu0 %388
        %390 = vrot.lane.b32.xlu0 %v366, 127
        %v391 = vpop.permute.xlu0 %390
        %392 = vrot.lane.b32.xlu0 %v367, 127
        %v393 = vpop.permute.xlu0 %392
        %394 = vrot.lane.b32.xlu0 %v368, 127
        %v395 = vpop.permute.xlu0 %394
        %396 = vrot.lane.b32.xlu0 %v369, 127
        %v397 = vpop.permute.xlu0 %396
        %398 = vrot.lane.b32.xlu0 %v370, 127
        %v399 = vpop.permute.xlu0 %398
        %400 = vrot.lane.b32.xlu0 %v381, 127
        %v401 = vpop.permute.xlu0 %400
        %vm402 = vcmask 1039360
        %v403 = vsel %vm402, %v389, %v391
        %v404 = vsel %vm402, %v391, %v393
        %v405 = vsel %vm402, %v393, %v395
        %v406 = vsel %vm402, %v395, %v397
        %v407 = vsel %vm402, %v397, %v399
        %v408 = vsel %vm402, %v399, %v401
        %415 = vst [vmem:[#allocation2 + $0x30] sm:$0xff] %v403
        %416 = vst [vmem:[#allocation2 + $0x38] sm:$0xff] %v404
        %417 = vst [vmem:[#allocation2 + $0x40] sm:$0xff] %v405
        %418 = vst [vmem:[#allocation2 + $0x48] sm:$0xff] %v406
        %419 = vst [vmem:[#allocation2 + $0x50] sm:$0xff] %v407
        %420 = vst [vmem:[#allocation2 + $0x58] sm:$0xff] %v408
        %421 = vrot.lane.b32.xlu0 %v365, 119
        %v422 = vpop.permute.xlu0 %421
        %423 = vrot.lane.b32.xlu0 %v366, 119
        %v424 = vpop.permute.xlu0 %423
        %425 = vrot.lane.b32.xlu0 %v367, 119
        %v426 = vpop.permute.xlu0 %425
        %427 = vrot.lane.b32.xlu0 %v368, 119
        %v428 = vpop.permute.xlu0 %427
        %429 = vrot.lane.b32.xlu0 %v369, 119
        %v430 = vpop.permute.xlu0 %429
        %431 = vrot.lane.b32.xlu0 %v370, 119
        %v432 = vpop.permute.xlu0 %431
        %433 = vrot.lane.b32.xlu0 %v381, 119
        %v434 = vpop.permute.xlu0 %433
        %vm435 = vcmask 973824
        %v436 = vsel %vm435, %v422, %v424
        %v437 = vsel %vm435, %v424, %v426
        %v438 = vsel %vm435, %v426, %v428
        %v439 = vsel %vm435, %v428, %v430
        %v440 = vsel %vm435, %v430, %v432
        %v441 = vsel %vm435, %v432, %v434
        %448 = vst [vmem:[#allocation2 + $0x60] sm:$0xff] %v436
        %449 = vst [vmem:[#allocation2 + $0x68] sm:$0xff] %v437
        %450 = vst [vmem:[#allocation2 + $0x70] sm:$0xff] %v438
        %451 = vst [vmem:[#allocation2 + $0x78] sm:$0xff] %v439
        %452 = vst [vmem:[#allocation2 + $0x80] sm:$0xff] %v440
        %453 = vst [vmem:[#allocation2 + $0x88] sm:$0xff] %v441
        %454 = vrot.lane.b32.xlu0 %v365, 118
        %v455 = vpop.permute.xlu0 %454
        %456 = vrot.lane.b32.xlu0 %v366, 118
        %v457 = vpop.permute.xlu0 %456
        %458 = vrot.lane.b32.xlu0 %v367, 118
        %v459 = vpop.permute.xlu0 %458
        %460 = vrot.lane.b32.xlu0 %v368, 118
        %v461 = vpop.permute.xlu0 %460
        %462 = vrot.lane.b32.xlu0 %v369, 118
        %v463 = vpop.permute.xlu0 %462
        %464 = vrot.lane.b32.xlu0 %v370, 118
        %v465 = vpop.permute.xlu0 %464
        %466 = vrot.lane.b32.xlu0 %v381, 118
        %v467 = vpop.permute.xlu0 %466
        %vm468 = vcmask 965632
        %v469 = vsel %vm468, %v455, %v457
        %v470 = vsel %vm468, %v457, %v459
        %v471 = vsel %vm468, %v459, %v461
        %v472 = vsel %vm468, %v461, %v463
        %v473 = vsel %vm468, %v463, %v465
        %v474 = vsel %vm468, %v465, %v467
        %481 = vst [vmem:[#allocation2 + $0x90] sm:$0xff] %v469
        %482 = vst [vmem:[#allocation2 + $0x98] sm:$0xff] %v470
        %483 = vst [vmem:[#allocation2 + $0xa0] sm:$0xff] %v471
        %484 = vst [vmem:[#allocation2 + $0xa8] sm:$0xff] %v472
        %485 = vst [vmem:[#allocation2 + $0xb0] sm:$0xff] %v473
        %486 = vst [vmem:[#allocation2 + $0xb8] sm:$0xff] %v474
        %487 = vrot.lane.b32.xlu0 %v365, 47
        %v488 = vpop.permute.xlu0 %487
        %489 = vrot.lane.b32.xlu0 %v366, 47
        %v490 = vpop.permute.xlu0 %489
        %491 = vrot.lane.b32.xlu0 %v367, 47
        %v492 = vpop.permute.xlu0 %491
        %493 = vrot.lane.b32.xlu0 %v368, 47
        %v494 = vpop.permute.xlu0 %493
        %495 = vrot.lane.b32.xlu0 %v369, 47
        %v496 = vpop.permute.xlu0 %495
        %497 = vrot.lane.b32.xlu0 %v370, 47
        %v498 = vpop.permute.xlu0 %497
        %499 = vrot.lane.b32.xlu0 %v381, 47
        %v500 = vpop.permute.xlu0 %499
        %vm501 = vcmask 384000
        %v502 = vsel %vm501, %v488, %v490
        %v503 = vsel %vm501, %v490, %v492
        %v504 = vsel %vm501, %v492, %v494
        %v505 = vsel %vm501, %v494, %v496
        %v506 = vsel %vm501, %v496, %v498
        %v507 = vsel %vm501, %v498, %v500
        %514 = vst [vmem:[#allocation2 + $0xc0] sm:$0xff] %v502
        %515 = vst [vmem:[#allocation2 + $0xc8] sm:$0xff] %v503
        %516 = vst [vmem:[#allocation2 + $0xd0] sm:$0xff] %v504
        %517 = vst [vmem:[#allocation2 + $0xd8] sm:$0xff] %v505
        %518 = vst [vmem:[#allocation2 + $0xe0] sm:$0xff] %v506
        %519 = vst [vmem:[#allocation2 + $0xe8] sm:$0xff] %v507
        %520 = vrot.lane.b32.xlu0 %v365, 46
        %v521 = vpop.permute.xlu0 %520
        %522 = vrot.lane.b32.xlu0 %v366, 46
        %v523 = vpop.permute.xlu0 %522
        %524 = vrot.lane.b32.xlu0 %v367, 46
        %v525 = vpop.permute.xlu0 %524
        %526 = vrot.lane.b32.xlu0 %v368, 46
        %v527 = vpop.permute.xlu0 %526
        %528 = vrot.lane.b32.xlu0 %v369, 46
        %v529 = vpop.permute.xlu0 %528
        %530 = vrot.lane.b32.xlu0 %v370, 46
        %v531 = vpop.permute.xlu0 %530
        %532 = vrot.lane.b32.xlu0 %v381, 46
        %v533 = vpop.permute.xlu0 %532
        %vm534 = vcmask 375808
        %v535 = vsel %vm534, %v521, %v523
        %v536 = vsel %vm534, %v523, %v525
        %v537 = vsel %vm534, %v525, %v527
        %v538 = vsel %vm534, %v527, %v529
        %v539 = vsel %vm534, %v529, %v531
        %v540 = vsel %vm534, %v531, %v533
        %547 = vst [vmem:[#allocation2 + $0xf0] sm:$0xff] %v535
        %548 = vst [vmem:[#allocation2 + $0xf8] sm:$0xff] %v536
        %549 = vst [vmem:[#allocation2 + $0x100] sm:$0xff] %v537
        %550 = vst [vmem:[#allocation2 + $0x108] sm:$0xff] %v538
        %551 = vst [vmem:[#allocation2 + $0x110] sm:$0xff] %v539
        %552 = vst [vmem:[#allocation2 + $0x118] sm:$0xff] %v540
        %553 = vrot.lane.b32.xlu0 %v365, 38
        %v554 = vpop.permute.xlu0 %553
        %555 = vrot.lane.b32.xlu0 %v366, 38
        %v556 = vpop.permute.xlu0 %555
        %557 = vrot.lane.b32.xlu0 %v367, 38
        %v558 = vpop.permute.xlu0 %557
        %559 = vrot.lane.b32.xlu0 %v368, 38
        %v560 = vpop.permute.xlu0 %559
        %561 = vrot.lane.b32.xlu0 %v369, 38
        %v562 = vpop.permute.xlu0 %561
        %563 = vrot.lane.b32.xlu0 %v370, 38
        %v564 = vpop.permute.xlu0 %563
        %565 = vrot.lane.b32.xlu0 %v381, 38
        %v566 = vpop.permute.xlu0 %565
        %vm567 = vcmask 310272
        %v568 = vsel %vm567, %v554, %v556
        %v569 = vsel %vm567, %v556, %v558
        %v570 = vsel %vm567, %v558, %v560
        %v571 = vsel %vm567, %v560, %v562
        %v572 = vsel %vm567, %v562, %v564
        %v573 = vsel %vm567, %v564, %v566
        %580 = vst [vmem:[#allocation2 + $0x120] sm:$0xff] %v568
        %581 = vst [vmem:[#allocation2 + $0x128] sm:$0xff] %v569
        %582 = vst [vmem:[#allocation2 + $0x130] sm:$0xff] %v570
        %583 = vst [vmem:[#allocation2 + $0x138] sm:$0xff] %v571
        %584 = vst [vmem:[#allocation2 + $0x140] sm:$0xff] %v572
        %585 = vst [vmem:[#allocation2 + $0x148] sm:$0xff] %v573
        %586 = vrot.lane.b32.xlu0 %v365, 37
        %v587 = vpop.permute.xlu0 %586
        %588 = vrot.lane.b32.xlu0 %v366, 37
        %v589 = vpop.permute.xlu0 %588
        %590 = vrot.lane.b32.xlu0 %v367, 37
        %v591 = vpop.permute.xlu0 %590
        %592 = vrot.lane.b32.xlu0 %v368, 37
        %v593 = vpop.permute.xlu0 %592
        %594 = vrot.lane.b32.xlu0 %v369, 37
        %v595 = vpop.permute.xlu0 %594
        %596 = vrot.lane.b32.xlu0 %v370, 37
        %v597 = vpop.permute.xlu0 %596
        %598 = vrot.lane.b32.xlu0 %v381, 37
        %v599 = vpop.permute.xlu0 %598
        %vm600 = vcmask 302080
        %v601 = vsel %vm600, %v587, %v589
        %v602 = vsel %vm600, %v589, %v591
        %v603 = vsel %vm600, %v591, %v593
        %v604 = vsel %vm600, %v593, %v595
        %v605 = vsel %vm600, %v595, %v597
        %v606 = vsel %vm600, %v597, %v599
        %613 = vst [vmem:[#allocation2 + $0x150] sm:$0xff] %v601
        %614 = vst [vmem:[#allocation2 + $0x158] sm:$0xff] %v602
        %615 = vst [vmem:[#allocation2 + $0x160] sm:$0xff] %v603
        %616 = vst [vmem:[#allocation2 + $0x168] sm:$0xff] %v604
        %617 = vst [vmem:[#allocation2 + $0x170] sm:$0xff] %v605
        %618 = vst [vmem:[#allocation2 + $0x178] sm:$0xff] %v606
        %v619 = vld [vmem:[%s325] sm:$0xf]
        %v620 = vld [vmem:[%s325 + $0x4] sm:$0xf]
        %v621 = vld [vmem:[%s325 + $0x8] sm:$0xf]
        %v622 = vld [vmem:[%s325 + $0xc] sm:$0xf]
        %v623 = vld [vmem:[%s325 + $0x10] sm:$0xf]
        %v624 = vld [vmem:[%s325 + $0x14] sm:$0xf]
        %v625 = vld [vmem:[%s325 + $0x18] sm:$0xf]
        %v626 = vld [vmem:[%s325 + $0x1c] sm:$0xf]
        %v627 = vld [vmem:[#allocation2] sm:$0xff]
        %v628 = vld [vmem:[#allocation2 + $0x8] sm:$0xff]
        %v629 = vld [vmem:[#allocation2 + $0x10] sm:$0xff]
        %v630 = vld [vmem:[#allocation2 + $0x18] sm:$0xff]
        %v631 = vld [vmem:[#allocation2 + $0x20] sm:$0xff]
        %v632 = vld [vmem:[#allocation2 + $0x28] sm:$0xff]
        %v633 = vld [vmem:[#allocation2 + $0x30] sm:$0xff]
        %v634 = vld [vmem:[#allocation2 + $0x38] sm:$0xff]
        %v635 = vld [vmem:[#allocation2 + $0x40] sm:$0xff]
        %v636 = vld [vmem:[#allocation2 + $0x48] sm:$0xff]
        %v637 = vld [vmem:[#allocation2 + $0x50] sm:$0xff]
        %v638 = vld [vmem:[#allocation2 + $0x58] sm:$0xff]
        %v639 = vld [vmem:[#allocation2 + $0x60] sm:$0xff]
        %v640 = vld [vmem:[#allocation2 + $0x68] sm:$0xff]
        %v641 = vld [vmem:[#allocation2 + $0x70] sm:$0xff]
        %v642 = vld [vmem:[#allocation2 + $0x78] sm:$0xff]
        %v643 = vld [vmem:[#allocation2 + $0x80] sm:$0xff]
        %v644 = vld [vmem:[#allocation2 + $0x88] sm:$0xff]
        %v645 = vld [vmem:[#allocation2 + $0x90] sm:$0xff]
        %v646 = vld [vmem:[#allocation2 + $0x98] sm:$0xff]
        %v647 = vld [vmem:[#allocation2 + $0xa0] sm:$0xff]
        %v648 = vld [vmem:[#allocation2 + $0xa8] sm:$0xff]
        %v649 = vld [vmem:[#allocation2 + $0xb0] sm:$0xff]
        %v650 = vld [vmem:[#allocation2 + $0xb8] sm:$0xff]
        %v651 = vld [vmem:[#allocation2 + $0xc0] sm:$0xff]
        %v652 = vld [vmem:[#allocation2 + $0xc8] sm:$0xff]
        %v653 = vld [vmem:[#allocation2 + $0xd0] sm:$0xff]
        %v654 = vld [vmem:[#allocation2 + $0xd8] sm:$0xff]
        %v655 = vld [vmem:[#allocation2 + $0xe0] sm:$0xff]
        %v656 = vld [vmem:[#allocation2 + $0xe8] sm:$0xff]
        %v657 = vld [vmem:[#allocation2 + $0xf0] sm:$0xff]
        %v658 = vld [vmem:[#allocation2 + $0xf8] sm:$0xff]
        %v659 = vld [vmem:[#allocation2 + $0x100] sm:$0xff]
        %v660 = vld [vmem:[#allocation2 + $0x108] sm:$0xff]
        %v661 = vld [vmem:[#allocation2 + $0x110] sm:$0xff]
        %v662 = vld [vmem:[#allocation2 + $0x118] sm:$0xff]
        %v663 = vld [vmem:[#allocation2 + $0x120] sm:$0xff]
        %v664 = vld [vmem:[#allocation2 + $0x128] sm:$0xff]
        %v665 = vld [vmem:[#allocation2 + $0x130] sm:$0xff]
        %v666 = vld [vmem:[#allocation2 + $0x138] sm:$0xff]
        %v667 = vld [vmem:[#allocation2 + $0x140] sm:$0xff]
        %v668 = vld [vmem:[#allocation2 + $0x148] sm:$0xff]
        %v669 = vld [vmem:[#allocation2 + $0x150] sm:$0xff]
        %v670 = vld [vmem:[#allocation2 + $0x158] sm:$0xff]
        %v671 = vld [vmem:[#allocation2 + $0x160] sm:$0xff]
        %v672 = vld [vmem:[#allocation2 + $0x168] sm:$0xff]
        %v673 = vld [vmem:[#allocation2 + $0x170] sm:$0xff]
        %v674 = vld [vmem:[#allocation2 + $0x178] sm:$0xff]
        %v675 = vld [vmem:[%s331] sm:$0xff]
        %v676 = vld [vmem:[%s331 + $0x8] sm:$0xff]
        %v677 = vld [vmem:[%s331 + $0x10] sm:$0xff]
        %v678 = vld [vmem:[%s331 + $0x18] sm:$0xff]
        %v679 = vld [vmem:[%s331 + $0x20] sm:$0xff]
        %v680 = vld [vmem:[%s331 + $0x28] sm:$0xff]
        %v681 = vld [vmem:[%s331 + $0x30] sm:$0xff]
        %v682 = vld [vmem:[%s331 + $0x38] sm:$0xff]
        %684 = vset.pattern.permute.xlu0 0
        %685 = vperm.xlu0 %684, %v675
        %v686 = vpop.permute.xlu0 %685
        %689 = vset.pattern.permute.xlu0 0
        %690 = vperm.xlu0 %689, %v676
        %v691 = vpop.permute.xlu0 %690
        %694 = vset.pattern.permute.xlu0 0
        %695 = vperm.xlu0 %694, %v677
        %v696 = vpop.permute.xlu0 %695
        %699 = vset.pattern.permute.xlu0 0
        %700 = vperm.xlu0 %699, %v678
        %v701 = vpop.permute.xlu0 %700
        %704 = vset.pattern.permute.xlu0 0
        %705 = vperm.xlu0 %704, %v679
        %v706 = vpop.permute.xlu0 %705
        %709 = vset.pattern.permute.xlu0 0
        %710 = vperm.xlu0 %709, %v680
        %v711 = vpop.permute.xlu0 %710
        %714 = vset.pattern.permute.xlu0 0
        %715 = vperm.xlu0 %714, %v681
        %v716 = vpop.permute.xlu0 %715
        %719 = vset.pattern.permute.xlu0 0
        %720 = vperm.xlu0 %719, %v682
        %v721 = vpop.permute.xlu0 %720
        %v731 = vunpack.c.l.b16 %v619
        %v732 = vunpack.c.l.b16 %v620
        %v733 = vunpack.c.l.b16 %v621
        %v734 = vunpack.c.l.b16 %v622
        %v735 = vunpack.c.l.b16 %v623
        %v736 = vunpack.c.l.b16 %v624
        %v737 = vunpack.c.l.b16 %v625
        %v738 = vunpack.c.l.b16 %v626
        %v739 = vpack.c.b16 %v732, %v731
        %v740 = vpack.c.b16 %v734, %v733
        %v741 = vpack.c.b16 %v736, %v735
        %v742 = vpack.c.b16 %v738, %v737
        %747 = vmatprep.subr.bf16.mxu0 %v628
        %748 = vmatpush1.bf16.msra.mxu0 %v627
        %749 = vmatprep.subr.bf16.mxu0 %v634
        %750 = vmatpush1.bf16.msra.mxu0 %v633
        %751 = vmatprep.subr.bf16.mxu0 %v640
        %752 = vmatpush1.bf16.msra.mxu0 %v639
        %753 = vmatprep.subr.bf16.mxu0 %v646
        %754 = vmatpush1.bf16.msra.mxu0 %v645
        %755 = vmatprep.subr.bf16.mxu0 %v652
        %756 = vmatpush1.bf16.msra.mxu0 %v651
        %757 = vmatprep.subr.bf16.mxu0 %v658
        %758 = vmatpush1.bf16.msra.mxu0 %v657
        %759 = vmatprep.subr.bf16.mxu0 %v664
        %760 = vmatpush1.bf16.msra.mxu0 %v663
        %761 = vmatprep.subr.bf16.mxu0 %v670
        %762 = vmatpush1.bf16.msra.mxu0 %v669
        %763 = vmatprep.subr.bf16.mxu0 0
        %764 = vmatpush1.bf16.msra.mxu0 0
        %765 = vmatprep.subr.bf16.mxu0 0
        %766 = vmatpush1.bf16.msra.mxu0 0
        %767 = vmatprep.subr.bf16.mxu0 0
        %768 = vmatpush1.bf16.msra.mxu0 0
        %769 = vmatprep.subr.bf16.mxu0 0
        %770 = vmatpush1.bf16.msra.mxu0 0
        %771 = vmatprep.subr.bf16.mxu0 0
        %772 = vmatpush1.bf16.msra.mxu0 0
        %773 = vmatprep.subr.bf16.mxu0 0
        %774 = vmatpush1.bf16.msra.mxu0 0
        %775 = vmatprep.subr.bf16.mxu0 0
        %776 = vmatpush1.bf16.msra.mxu0 0
        %777 = vmatprep.subr.bf16.mxu0 0
        %778 = vmatpush1.bf16.msra.mxu0 0
        %779 = vmatprep.mubr.bf16.mxu0 0
        %780 = vmatmul.mubr.bf16.gmra.mrb[0].mxu0 %v739
        %v781 = vpop.f32.mrb[0].mxu0
        %v782 = vadd.f32 %v686, %v781
        %v783 = vpop.f32.mrb[0].mxu0
        %v784 = vadd.f32 %v686, %v783
        %v785 = vpop.f32.mrb[0].mxu0
        %v786 = vadd.f32 %v691, %v785
        %v787 = vpop.f32.mrb[0].mxu0
        %v788 = vadd.f32 %v691, %v787
        %789 = vmatprep.mubr.bf16.mxu0 0
        %790 = vmatmul.mubr.bf16.gmra.mrb[0].mxu0 %v740
        %v791 = vpop.f32.mrb[0].mxu0
        %v792 = vadd.f32 %v696, %v791
        %v793 = vpop.f32.mrb[0].mxu0
        %v794 = vadd.f32 %v696, %v793
        %v795 = vpop.f32.mrb[0].mxu0
        %v796 = vadd.f32 %v701, %v795
        %v797 = vpop.f32.mrb[0].mxu0
        %v798 = vadd.f32 %v701, %v797
        %799 = vmatprep.mubr.bf16.mxu0 0
        %800 = vmatmul.mubr.bf16.gmra.mrb[0].mxu0 %v741
        %v801 = vpop.f32.mrb[0].mxu0
        %v802 = vadd.f32 %v706, %v801
        %v803 = vpop.f32.mrb[0].mxu0
        %v804 = vadd.f32 %v706, %v803
        %v805 = vpop.f32.mrb[0].mxu0
        %v806 = vadd.f32 %v711, %v805
        %v807 = vpop.f32.mrb[0].mxu0
        %v808 = vadd.f32 %v711, %v807
        %809 = vmatprep.mubr.bf16.mxu0 0
        %810 = vmatmul.mubr.bf16.gmra.mrb[0].mxu0 %v742
        %v811 = vpop.f32.mrb[0].mxu0
        %v812 = vadd.f32 %v716, %v811
        %v813 = vpop.f32.mrb[0].mxu0
        %v814 = vadd.f32 %v716, %v813
        %v815 = vpop.f32.mrb[0].mxu0
        %v816 = vadd.f32 %v721, %v815
        %v817 = vpop.f32.mrb[0].mxu0
        %v818 = vadd.f32 %v721, %v817
        %819 = vdwg.mxu0
        %820 = vmatprep.subr.bf16.mxu0 %v630
        %821 = vmatpush1.bf16.msra.mxu0 %v629
        %822 = vmatprep.subr.bf16.mxu0 %v636
        %823 = vmatpush1.bf16.msra.mxu0 %v635
        %824 = vmatprep.subr.bf16.mxu0 %v642
        %825 = vmatpush1.bf16.msra.mxu0 %v641
        %826 = vmatprep.subr.bf16.mxu0 %v648
        %827 = vmatpush1.bf16.msra.mxu0 %v647
        %828 = vmatprep.subr.bf16.mxu0 %v654
        %829 = vmatpush1.bf16.msra.mxu0 %v653
        %830 = vmatprep.subr.bf16.mxu0 %v660
        %831 = vmatpush1.bf16.msra.mxu0 %v659
        %832 = vmatprep.subr.bf16.mxu0 %v666
        %833 = vmatpush1.bf16.msra.mxu0 %v665
        %834 = vmatprep.subr.bf16.mxu0 %v672
        %835 = vmatpush1.bf16.msra.mxu0 %v671
        %836 = vmatprep.subr.bf16.mxu0 0
        %837 = vmatpush1.bf16.msra.mxu0 0
        %838 = vmatprep.subr.bf16.mxu0 0
        %839 = vmatpush1.bf16.msra.mxu0 0
        %840 = vmatprep.subr.bf16.mxu0 0
        %841 = vmatpush1.bf16.msra.mxu0 0
        %842 = vmatprep.subr.bf16.mxu0 0
        %843 = vmatpush1.bf16.msra.mxu0 0
        %844 = vmatprep.subr.bf16.mxu0 0
        %845 = vmatpush1.bf16.msra.mxu0 0
        %846 = vmatprep.subr.bf16.mxu0 0
        %847 = vmatpush1.bf16.msra.mxu0 0
        %848 = vmatprep.subr.bf16.mxu0 0
        %849 = vmatpush1.bf16.msra.mxu0 0
        %850 = vmatprep.subr.bf16.mxu0 0
        %851 = vmatpush1.bf16.msra.mxu0 0
        %852 = vmatprep.mubr.bf16.mxu0 0
        %853 = vmatmul.mubr.bf16.gmra.mrb[0].mxu0 %v739
        %v854 = vpop.f32.mrb[0].mxu0
        %v855 = vadd.f32 %v686, %v854
        %v856 = vpop.f32.mrb[0].mxu0
        %v857 = vadd.f32 %v686, %v856
        %v858 = vpop.f32.mrb[0].mxu0
        %v859 = vadd.f32 %v691, %v858
        %v860 = vpop.f32.mrb[0].mxu0
        %v861 = vadd.f32 %v691, %v860
        %862 = vmatprep.mubr.bf16.mxu0 0
        %863 = vmatmul.mubr.bf16.gmra.mrb[0].mxu0 %v740
        %v864 = vpop.f32.mrb[0].mxu0
        %v865 = vadd.f32 %v696, %v864
        %v866 = vpop.f32.mrb[0].mxu0
        %v867 = vadd.f32 %v696, %v866
        %v868 = vpop.f32.mrb[0].mxu0
        %v869 = vadd.f32 %v701, %v868
        %v870 = vpop.f32.mrb[0].mxu0
        %v871 = vadd.f32 %v701, %v870
        %872 = vmatprep.mubr.bf16.mxu0 0
        %873 = vmatmul.mubr.bf16.gmra.mrb[0].mxu0 %v741
        %v874 = vpop.f32.mrb[0].mxu0
        %v875 = vadd.f32 %v706, %v874
        %v876 = vpop.f32.mrb[0].mxu0
        %v877 = vadd.f32 %v706, %v876
        %v878 = vpop.f32.mrb[0].mxu0
        %v879 = vadd.f32 %v711, %v878
        %v880 = vpop.f32.mrb[0].mxu0
        %v881 = vadd.f32 %v711, %v880
        %882 = vmatprep.mubr.bf16.mxu0 0
        %883 = vmatmul.mubr.bf16.gmra.mrb[0].mxu0 %v742
        %v884 = vpop.f32.mrb[0].mxu0
        %v885 = vadd.f32 %v716, %v884
        %v886 = vpop.f32.mrb[0].mxu0
        %v887 = vadd.f32 %v716, %v886
        %v888 = vpop.f32.mrb[0].mxu0
        %v889 = vadd.f32 %v721, %v888
        %v890 = vpop.f32.mrb[0].mxu0
        %v891 = vadd.f32 %v721, %v890
        %892 = vdwg.mxu0
        %893 = vmatprep.subr.bf16.mxu0 %v632
        %894 = vmatpush1.bf16.msra.mxu0 %v631
        %895 = vmatprep.subr.bf16.mxu0 %v638
        %896 = vmatpush1.bf16.msra.mxu0 %v637
        %897 = vmatprep.subr.bf16.mxu0 %v644
        %898 = vmatpush1.bf16.msra.mxu0 %v643
        %899 = vmatprep.subr.bf16.mxu0 %v650
        %900 = vmatpush1.bf16.msra.mxu0 %v649
        %901 = vmatprep.subr.bf16.mxu0 %v656
        %902 = vmatpush1.bf16.msra.mxu0 %v655
        %903 = vmatprep.subr.bf16.mxu0 %v662
        %904 = vmatpush1.bf16.msra.mxu0 %v661
        %905 = vmatprep.subr.bf16.mxu0 %v668
        %906 = vmatpush1.bf16.msra.mxu0 %v667
        %907 = vmatprep.subr.bf16.mxu0 %v674
        %908 = vmatpush1.bf16.msra.mxu0 %v673
        %909 = vmatprep.subr.bf16.mxu0 0
        %910 = vmatpush1.bf16.msra.mxu0 0
        %911 = vmatprep.subr.bf16.mxu0 0
        %912 = vmatpush1.bf16.msra.mxu0 0
        %913 = vmatprep.subr.bf16.mxu0 0
        %914 = vmatpush1.bf16.msra.mxu0 0
        %915 = vmatprep.subr.bf16.mxu0 0
        %916 = vmatpush1.bf16.msra.mxu0 0
        %917 = vmatprep.subr.bf16.mxu0 0
        %918 = vmatpush1.bf16.msra.mxu0 0
        %919 = vmatprep.subr.bf16.mxu0 0
        %920 = vmatpush1.bf16.msra.mxu0 0
        %921 = vmatprep.subr.bf16.mxu0 0
        %922 = vmatpush1.bf16.msra.mxu0 0
        %923 = vmatprep.subr.bf16.mxu0 0
        %924 = vmatpush1.bf16.msra.mxu0 0
        %925 = vmatprep.mubr.bf16.mxu0 0
        %926 = vmatmul.mubr.bf16.gmra.mrb[0].mxu0 %v739
        %v927 = vpop.f32.mrb[0].mxu0
        %v928 = vadd.f32 %v686, %v927
        %v929 = vpop.f32.mrb[0].mxu0
        %v930 = vadd.f32 %v686, %v929
        %v931 = vpop.f32.mrb[0].mxu0
        %v932 = vadd.f32 %v691, %v931
        %v933 = vpop.f32.mrb[0].mxu0
        %v934 = vadd.f32 %v691, %v933
        %935 = vmatprep.mubr.bf16.mxu0 0
        %936 = vmatmul.mubr.bf16.gmra.mrb[0].mxu0 %v740
        %v937 = vpop.f32.mrb[0].mxu0
        %v938 = vadd.f32 %v696, %v937
        %v939 = vpop.f32.mrb[0].mxu0
        %v940 = vadd.f32 %v696, %v939
        %v941 = vpop.f32.mrb[0].mxu0
        %v942 = vadd.f32 %v701, %v941
        %v943 = vpop.f32.mrb[0].mxu0
        %v944 = vadd.f32 %v701, %v943
        %945 = vmatprep.mubr.bf16.mxu0 0
        %946 = vmatmul.mubr.bf16.gmra.mrb[0].mxu0 %v741
        %v947 = vpop.f32.mrb[0].mxu0
        %v948 = vadd.f32 %v706, %v947
        %v949 = vpop.f32.mrb[0].mxu0
        %v950 = vadd.f32 %v706, %v949
        %v951 = vpop.f32.mrb[0].mxu0
        %v952 = vadd.f32 %v711, %v951
        %v953 = vpop.f32.mrb[0].mxu0
        %v954 = vadd.f32 %v711, %v953
        %955 = vmatprep.mubr.bf16.mxu0 0
        %956 = vmatmul.mubr.bf16.gmra.mrb[0].mxu0 %v742
        %v957 = vpop.f32.mrb[0].mxu0
        %v958 = vadd.f32 %v716, %v957
        %v959 = vpop.f32.mrb[0].mxu0
        %v960 = vadd.f32 %v716, %v959
        %v961 = vpop.f32.mrb[0].mxu0
        %v962 = vadd.f32 %v721, %v961
        %v963 = vpop.f32.mrb[0].mxu0
        %v964 = vadd.f32 %v721, %v963
        %965 = vdwg.mxu0
        %v966 = vmax.f32 %v782, 0.0
        %v967 = vmax.f32 %v784, 0.0
        %v968 = vmax.f32 %v855, 0.0
        %v969 = vmax.f32 %v857, 0.0
        %v970 = vmax.f32 %v928, 0.0
        %v971 = vmax.f32 %v930, 0.0
        %v972 = vmax.f32 %v786, 0.0
        %v973 = vmax.f32 %v788, 0.0
        %v974 = vmax.f32 %v859, 0.0
        %v975 = vmax.f32 %v861, 0.0
        %v976 = vmax.f32 %v932, 0.0
        %v977 = vmax.f32 %v934, 0.0
        %v978 = vmax.f32 %v792, 0.0
        %v979 = vmax.f32 %v794, 0.0
        %v980 = vmax.f32 %v865, 0.0
        %v981 = vmax.f32 %v867, 0.0
        %v982 = vmax.f32 %v938, 0.0
        %v983 = vmax.f32 %v940, 0.0
        %v984 = vmax.f32 %v796, 0.0
        %v985 = vmax.f32 %v798, 0.0
        %v986 = vmax.f32 %v869, 0.0
        %v987 = vmax.f32 %v871, 0.0
        %v988 = vmax.f32 %v942, 0.0
        %v989 = vmax.f32 %v944, 0.0
        %v990 = vmax.f32 %v802, 0.0
        %v991 = vmax.f32 %v804, 0.0
        %v992 = vmax.f32 %v875, 0.0
        %v993 = vmax.f32 %v877, 0.0
        %v994 = vmax.f32 %v948, 0.0
        %v995 = vmax.f32 %v950, 0.0
        %v996 = vmax.f32 %v806, 0.0
        %v997 = vmax.f32 %v808, 0.0
        %v998 = vmax.f32 %v879, 0.0
        %v999 = vmax.f32 %v881, 0.0
        %v1000 = vmax.f32 %v952, 0.0
        %v1001 = vmax.f32 %v954, 0.0
        %v1002 = vmax.f32 %v812, 0.0
        %v1003 = vmax.f32 %v814, 0.0
        %v1004 = vmax.f32 %v885, 0.0
        %v1005 = vmax.f32 %v887, 0.0
        %v1006 = vmax.f32 %v958, 0.0
        %v1007 = vmax.f32 %v960, 0.0
        %v1008 = vmax.f32 %v816, 0.0
        %v1009 = vmax.f32 %v818, 0.0
        %v1010 = vmax.f32 %v889, 0.0
        %v1011 = vmax.f32 %v891, 0.0
        %v1012 = vmax.f32 %v962, 0.0
        %v1013 = vmax.f32 %v964, 0.0
        %v1014 = vpack.c.bf16 %v972, %v966
        %v1015 = vpack.c.bf16 %v973, %v967
        %v1016 = vpack.c.bf16 %v974, %v968
        %v1017 = vpack.c.bf16 %v975, %v969
        %v1018 = vpack.c.bf16 %v976, %v970
        %v1019 = vpack.c.bf16 %v977, %v971
        %v1020 = vpack.c.bf16 %v984, %v978
        %v1021 = vpack.c.bf16 %v985, %v979
        %v1022 = vpack.c.bf16 %v986, %v980
        %v1023 = vpack.c.bf16 %v987, %v981
        %v1024 = vpack.c.bf16 %v988, %v982
        %v1025 = vpack.c.bf16 %v989, %v983
        %v1026 = vpack.c.bf16 %v996, %v990
        %v1027 = vpack.c.bf16 %v997, %v991
        %v1028 = vpack.c.bf16 %v998, %v992
        %v1029 = vpack.c.bf16 %v999, %v993
        %v1030 = vpack.c.bf16 %v1000, %v994
        %v1031 = vpack.c.bf16 %v1001, %v995
        %v1032 = vpack.c.bf16 %v1008, %v1002
        %v1033 = vpack.c.bf16 %v1009, %v1003
        %v1034 = vpack.c.bf16 %v1010, %v1004
        %v1035 = vpack.c.bf16 %v1011, %v1005
        %v1036 = vpack.c.bf16 %v1012, %v1006
        %v1037 = vpack.c.bf16 %v1013, %v1007
        %v1062 = vunpack.c.l.b16 %v1014
        %v1063 = vunpack.c.l.b16 %v1015
        %v1064 = vunpack.c.l.b16 %v1016
        %v1065 = vunpack.c.l.b16 %v1017
        %v1066 = vunpack.c.l.b16 %v1018
        %v1067 = vunpack.c.l.b16 %v1019
        %v1068 = vunpack.c.h.b16 %v1014
        %v1069 = vunpack.c.h.b16 %v1015
        %v1070 = vunpack.c.h.b16 %v1016
        %v1071 = vunpack.c.h.b16 %v1017
        %v1072 = vunpack.c.h.b16 %v1018
        %v1073 = vunpack.c.h.b16 %v1019
        %v1074 = vunpack.c.l.b16 %v1020
        %v1075 = vunpack.c.l.b16 %v1021
        %v1076 = vunpack.c.l.b16 %v1022
        %v1077 = vunpack.c.l.b16 %v1023
        %v1078 = vunpack.c.l.b16 %v1024
        %v1079 = vunpack.c.l.b16 %v1025
        %v1080 = vunpack.c.h.b16 %v1020
        %v1081 = vunpack.c.h.b16 %v1021
        %v1082 = vunpack.c.h.b16 %v1022
        %v1083 = vunpack.c.h.b16 %v1023
        %v1084 = vunpack.c.h.b16 %v1024
        %v1085 = vunpack.c.h.b16 %v1025
        %v1086 = vunpack.c.l.b16 %v1026
        %v1087 = vunpack.c.l.b16 %v1027
        %v1088 = vunpack.c.l.b16 %v1028
        %v1089 = vunpack.c.l.b16 %v1029
        %v1090 = vunpack.c.l.b16 %v1030
        %v1091 = vunpack.c.l.b16 %v1031
        %v1092 = vunpack.c.h.b16 %v1026
        %v1093 = vunpack.c.h.b16 %v1027
        %v1094 = vunpack.c.h.b16 %v1028
        %v1095 = vunpack.c.h.b16 %v1029
        %v1096 = vunpack.c.h.b16 %v1030
        %v1097 = vunpack.c.h.b16 %v1031
        %v1098 = vunpack.c.l.b16 %v1032
        %v1099 = vunpack.c.l.b16 %v1033
        %v1100 = vunpack.c.l.b16 %v1034
        %v1101 = vunpack.c.l.b16 %v1035
        %v1102 = vunpack.c.l.b16 %v1036
        %v1103 = vunpack.c.l.b16 %v1037
        %v1104 = vunpack.c.h.b16 %v1032
        %v1105 = vunpack.c.h.b16 %v1033
        %v1106 = vunpack.c.h.b16 %v1034
        %v1107 = vunpack.c.h.b16 %v1035
        %v1108 = vunpack.c.h.b16 %v1036
        %v1109 = vunpack.c.h.b16 %v1037
        %v1110 = vpack.c.b16 %v1063, %v1062
        %v1111 = vpack.c.b16 %v1065, %v1064
        %v1112 = vpack.c.b16 %v1067, %v1066
        %v1113 = vpack.c.b16 %v1069, %v1068
        %v1114 = vpack.c.b16 %v1071, %v1070
        %v1115 = vpack.c.b16 %v1073, %v1072
        %v1116 = vpack.c.b16 %v1075, %v1074
        %v1117 = vpack.c.b16 %v1077, %v1076
        %v1118 = vpack.c.b16 %v1079, %v1078
        %v1119 = vpack.c.b16 %v1081, %v1080
        %v1120 = vpack.c.b16 %v1083, %v1082
        %v1121 = vpack.c.b16 %v1085, %v1084
        %v1122 = vpack.c.b16 %v1087, %v1086
        %v1123 = vpack.c.b16 %v1089, %v1088
        %v1124 = vpack.c.b16 %v1091, %v1090
        %v1125 = vpack.c.b16 %v1093, %v1092
        %v1126 = vpack.c.b16 %v1095, %v1094
        %v1127 = vpack.c.b16 %v1097, %v1096
        %v1128 = vpack.c.b16 %v1099, %v1098
        %v1129 = vpack.c.b16 %v1101, %v1100
        %v1130 = vpack.c.b16 %v1103, %v1102
        %v1131 = vpack.c.b16 %v1105, %v1104
        %v1132 = vpack.c.b16 %v1107, %v1106
        %v1133 = vpack.c.b16 %v1109, %v1108
        %1158 = vst [vmem:[%s320] sm:$0xff] %v1110
        %1159 = vst [vmem:[%s320 + $0x8] sm:$0xff] %v1111
        %1160 = vst [vmem:[%s320 + $0x10] sm:$0xff] %v1112
        %1161 = vst [vmem:[%s320 + $0x18] sm:$0xff] %v1113
        %1162 = vst [vmem:[%s320 + $0x20] sm:$0xff] %v1114
        %1163 = vst [vmem:[%s320 + $0x28] sm:$0xff] %v1115
        %1164 = vst [vmem:[%s320 + $0x30] sm:$0xff] %v1116
        %1165 = vst [vmem:[%s320 + $0x38] sm:$0xff] %v1117
        %1166 = vst [vmem:[%s320 + $0x40] sm:$0xff] %v1118
        %1167 = vst [vmem:[%s320 + $0x48] sm:$0xff] %v1119
        %1168 = vst [vmem:[%s320 + $0x50] sm:$0xff] %v1120
        %1169 = vst [vmem:[%s320 + $0x58] sm:$0xff] %v1121
        %1170 = vst [vmem:[%s320 + $0x60] sm:$0xff] %v1122
        %1171 = vst [vmem:[%s320 + $0x68] sm:$0xff] %v1123
        %1172 = vst [vmem:[%s320 + $0x70] sm:$0xff] %v1124
        %1173 = vst [vmem:[%s320 + $0x78] sm:$0xff] %v1125
        %1174 = vst [vmem:[%s320 + $0x80] sm:$0xff] %v1126
        %1175 = vst [vmem:[%s320 + $0x88] sm:$0xff] %v1127
        %1176 = vst [vmem:[%s320 + $0x90] sm:$0xff] %v1128
        %1177 = vst [vmem:[%s320 + $0x98] sm:$0xff] %v1129
        %1178 = vst [vmem:[%s320 + $0xa0] sm:$0xff] %v1130
        %1179 = vst [vmem:[%s320 + $0xa8] sm:$0xff] %v1131
        %1180 = vst [vmem:[%s320 + $0xb0] sm:$0xff] %v1132
        %1181 = vst [vmem:[%s320 + $0xb8] sm:$0xff] %v1133
        %s1182 = sand.u32 %s143, 1
        %s1183 = sand.u32 %s143, 1
        %s1184 = smul.addr %s1183, 192
        %s1185 = scalar_lea.vmem [#allocation5], %s1184
        // Predicated region
        $region83: #{deconv3d_block_forward.1} parent=73 // pred_check
          %p1186 = pneg %p153
        $region84: #{deconv3d_block_forward.1} parent=73 // pred_check_branch
          %1188 = sbr.rel (%p1186) target = $region86
        $region85: #{deconv3d_block_forward.1} parent=73 // pred_region
          %s1189 = smul.u32 8, %s20
          %s1190 = smul.u32 6, %s19
          %s1191 = smul.addr %s1189, 12
          %s1192 = sadd.s32 %s1190, %s1191
          %s1193 = smul.addr %s1192, 4
          %s1194 = scalar_lea.vmem %s4, %s1193
          // Predicated region
          $region87: #{deconv3d_block_forward.1} parent=85 // pred_check
            _
          $region88: #{deconv3d_block_forward.1} parent=85 // pred_check_branch
            %1196 = sbr.rel (0) target = $region90
          $region89: #{deconv3d_block_forward.1} parent=85 // pred_region
            // Predicated region
            $region91: #{deconv3d_block_forward.1} parent=89 // pred_check
              _
            $region92: #{deconv3d_block_forward.1} parent=89 // pred_check_branch
              %1198 = sbr.rel (0) target = $region94
            $region93: #{deconv3d_block_forward.1} parent=89 // pred_region
              loop: start=0, step=1, limit=1
              $region95: #{deconv3d_block_forward.1} parent=93 // loop_pre_header
                _
              $region96: #{deconv3d_block_forward.1} parent=93 // loop_header
                %s1200 = sphi 0, %s1204
                %p1201 = scmp.ge.s32.totalorder %s1200, 1
                %s1205 = sphi %s1185, %s1185
                %s1206 = sphi %s1194, %s1194
              $region97: #{deconv3d_block_forward.1} parent=93 // loop_header_branch
                %1203 = sbr.rel (%p1201) target = $region101
              $region98: #{deconv3d_block_forward.1} parent=93 // loop_body
                %v1207 = vld [vmem:[%s1205] sm:$0xff]
                %1208 = vst [vmem:[%s1206] sm:$0xff] %v1207
                %v1209 = vld [vmem:[%s1205 + $0x8] sm:$0xff]
                %1210 = vst [vmem:[%s1206 + $0x8] sm:$0xff] %v1209
                %v1211 = vld [vmem:[%s1205 + $0x10] sm:$0xff]
                %1212 = vst [vmem:[%s1206 + $0x10] sm:$0xff] %v1211
                %v1213 = vld [vmem:[%s1205 + $0x18] sm:$0xff]
                %1214 = vst [vmem:[%s1206 + $0x30] sm:$0xff] %v1213
                %v1215 = vld [vmem:[%s1205 + $0x20] sm:$0xff]
                %1216 = vst [vmem:[%s1206 + $0x38] sm:$0xff] %v1215
                %v1217 = vld [vmem:[%s1205 + $0x28] sm:$0xff]
                %1218 = vst [vmem:[%s1206 + $0x40] sm:$0xff] %v1217
                %v1219 = vld [vmem:[%s1205 + $0x30] sm:$0xff]
                %1220 = vst [vmem:[%s1206 + $0x60] sm:$0xff] %v1219
                %v1221 = vld [vmem:[%s1205 + $0x38] sm:$0xff]
                %1222 = vst [vmem:[%s1206 + $0x68] sm:$0xff] %v1221
                %v1223 = vld [vmem:[%s1205 + $0x40] sm:$0xff]
                %1224 = vst [vmem:[%s1206 + $0x70] sm:$0xff] %v1223
                %v1225 = vld [vmem:[%s1205 + $0x48] sm:$0xff]
                %1226 = vst [vmem:[%s1206 + $0x90] sm:$0xff] %v1225
                %v1227 = vld [vmem:[%s1205 + $0x50] sm:$0xff]
                %1228 = vst [vmem:[%s1206 + $0x98] sm:$0xff] %v1227
                %v1229 = vld [vmem:[%s1205 + $0x58] sm:$0xff]
                %1230 = vst [vmem:[%s1206 + $0xa0] sm:$0xff] %v1229
                %v1231 = vld [vmem:[%s1205 + $0x60] sm:$0xff]
                %1232 = vst [vmem:[%s1206 + $0xc0] sm:$0xff] %v1231
                %v1233 = vld [vmem:[%s1205 + $0x68] sm:$0xff]
                %1234 = vst [vmem:[%s1206 + $0xc8] sm:$0xff] %v1233
                %v1235 = vld [vmem:[%s1205 + $0x70] sm:$0xff]
                %1236 = vst [vmem:[%s1206 + $0xd0] sm:$0xff] %v1235
                %v1237 = vld [vmem:[%s1205 + $0x78] sm:$0xff]
                %1238 = vst [vmem:[%s1206 + $0xf0] sm:$0xff] %v1237
                %v1239 = vld [vmem:[%s1205 + $0x80] sm:$0xff]
                %1240 = vst [vmem:[%s1206 + $0xf8] sm:$0xff] %v1239
                %v1241 = vld [vmem:[%s1205 + $0x88] sm:$0xff]
                %1242 = vst [vmem:[%s1206 + $0x100] sm:$0xff] %v1241
                %v1243 = vld [vmem:[%s1205 + $0x90] sm:$0xff]
                %1244 = vst [vmem:[%s1206 + $0x120] sm:$0xff] %v1243
                %v1245 = vld [vmem:[%s1205 + $0x98] sm:$0xff]
                %1246 = vst [vmem:[%s1206 + $0x128] sm:$0xff] %v1245
                %v1247 = vld [vmem:[%s1205 + $0xa0] sm:$0xff]
                %1248 = vst [vmem:[%s1206 + $0x130] sm:$0xff] %v1247
                %v1249 = vld [vmem:[%s1205 + $0xa8] sm:$0xff]
                %1250 = vst [vmem:[%s1206 + $0x150] sm:$0xff] %v1249
                %v1251 = vld [vmem:[%s1205 + $0xb0] sm:$0xff]
                %1252 = vst [vmem:[%s1206 + $0x158] sm:$0xff] %v1251
                %v1253 = vld [vmem:[%s1205 + $0xb8] sm:$0xff]
                %1254 = vst [vmem:[%s1206 + $0x160] sm:$0xff] %v1253
              $region99: #{deconv3d_block_forward.1} parent=93 // loop_footer
                %s1204 = sadd.s32 1, %s1200
              $region100: #{deconv3d_block_forward.1} parent=93 // loop_footer_branch
                %1199 = sbr.rel target = $region96
              $region101: #{deconv3d_block_forward.1} parent=93 // loop_exit
                _
            $region94: #{deconv3d_block_forward.1} parent=89 // pred_fallthru
              _
            // Predicated region
            $region102: #{deconv3d_block_forward.1} parent=89 // pred_check
              _
            $region103: #{deconv3d_block_forward.1} parent=89 // pred_check_branch
              %1256 = sbr.rel target = $region105
            $region104: #{deconv3d_block_forward.1} parent=89 // pred_region
              _
            $region105: #{deconv3d_block_forward.1} parent=89 // pred_fallthru
              _
          $region90: #{deconv3d_block_forward.1} parent=85 // pred_fallthru
            _
          %1257 = vnop
        $region86: #{deconv3d_block_forward.1} parent=73 // pred_fallthru
          _
      $region74: #{deconv3d_block_forward.1} parent=5 // pred_fallthru
        _
      %p1258 = scmp.le.s32.totalorder 2, %s10
      // Predicated region
      $region106: #{deconv3d_block_forward.1} parent=5 // pred_check
        %p1259 = pneg %p1258
      $region107: #{deconv3d_block_forward.1} parent=5 // pred_check_branch
        %1261 = sbr.rel (%p1259) target = $region109
      $region108: #{deconv3d_block_forward.1} parent=5 // pred_region
        %s1262 = ssub.s32 %s10, 2
        // Predicated region
        $region110: #{deconv3d_block_forward.1} parent=108 // pred_check
          %p1263 = pneg %p159
        $region111: #{deconv3d_block_forward.1} parent=108 // pred_check_branch
          %1265 = sbr.rel (%p1263) target = $region113
        $region112: #{deconv3d_block_forward.1} parent=108 // pred_region
          %s1266 = sand.u32 %s144, 1
          %s1267 = sand.u32 %s144, 1
          %s1268 = smul.addr %s1267, 192
          %s1269 = scalar_lea.vmem [#allocation5], %s1268
        $region113: #{deconv3d_block_forward.1} parent=108 // pred_fallthru
          _
      $region109: #{deconv3d_block_forward.1} parent=5 // pred_fallthru
        _
    $region6: #{deconv3d_block_forward.1} parent=1 // loop_footer
      %s14 = sadd.s32 1, %s10
    $region7: #{deconv3d_block_forward.1} parent=1 // loop_footer_branch
      %9 = sbr.rel target = $region3
    $region8: #{deconv3d_block_forward.1} parent=1 // loop_exit
      _

</llo_original>
